<compile_context>
chip_gen: v7x
topology: tpu7x:2x2x1
jax: 0.10.0
libtpu: 0.0.40
codegen_flags: <defaults>
</compile_context>

<pallas_src>
import functools
import math

import jax
import jax.numpy as jnp
from jax.experimental import pallas as pl
from jax.experimental.pallas import tpu as pltpu


def _gelu_tanh(x):
    # Matches the module's own gelu(): 0.5*x*(1+tanh(sqrt(2/pi)*(x+0.044715*x^3)))
    c = math.sqrt(2.0 / math.pi)
    return 0.5 * x * (1.0 + jnp.tanh(c * (x + 0.044715 * (x * x * x))))


def _round_up(n, m):
    return ((n + m - 1) // m) * m


def fusion_kernel(x_ref, y_ref, w01_ref, w2_ref, b_ref, o_ref,
                  *, two_h, dot_dtype, split_xy):
    x = x_ref[...].astype(jnp.float32)          # (tm, 2H)
    y = y_ref[...].astype(jnp.float32)          # (tm, 2H)

    if split_xy:
        # v5e path: two K = 2H dots (matches the 128-deep MXU when 2H == 128).
        acc = jnp.dot(x.astype(dot_dtype), w01_ref[:two_h, :],
                      preferred_element_type=jnp.float32)
        acc = acc + jnp.dot(y.astype(dot_dtype), w01_ref[two_h:, :],
                            preferred_element_type=jnp.float32)
    else:
        # v6e/v7x path: one K = 4H dot. Concatenating two adjacent 2H-wide
        # (lane-aligned) slabs is layout-free, unlike the avoided 8H concat.
        xyc = jnp.concatenate([x, y], axis=-1).astype(dot_dtype)   # (tm, 4H)
        acc = jnp.dot(xyc, w01_ref[...], preferred_element_type=jnp.float32)

    acc = acc + jnp.dot((x * y).astype(dot_dtype), w2_ref[...],
                        preferred_element_type=jnp.float32)
    acc = acc + b_ref[...]                      # (tm, 4H), f32

    # r = gelu(first 2H columns), g = sigmoid(last 2H columns).
    # With 2H % 128 == 0 this split is a free, lane-aligned slice; for other
    # hidden sizes it still lowers correctly (XLU cost only).
    r = _gelu_tanh(acc[:, :two_h])
    g = jax.nn.sigmoid(acc[:, two_h:])

    # o = g*r + (1-g)*x  ==  x + g*(r - x)   (fewer VALU ops)
    o_ref[...] = (x + g * (r - x)).astype(o_ref.dtype)


def fusion_block(x, y, w_r, b_r, w_g, b_g, *, tm=1024, dot_dtype=None,
                 split_xy_dots=False, vmem_limit_bytes=None):
    """x, y: (M, 2H); w_*: (8H, 2H); b_*: (1, 2H) -> (M, 2H).

    dot_dtype:      MXU operand dtype (e.g. jnp.bfloat16 on v5e/v6e/v7x);
                    accumulation and all elementwise math stay in float32.
    split_xy_dots:  False (default) -> single K=4H dot for x/y (v6e/v7x);
                    True -> two K=2H dots (v5e's 128-deep MXU).
    """
    M, two_h = x.shape
    eight_h, out_h = w_r.shape
    assert out_h == two_h and eight_h == 4 * two_h
    four_h = 2 * two_h
    if dot_dtype is None:
        dot_dtype = jnp.float32

    # Fuse the two linears along N and fold the (x - y) term into W0/W1:
    #   feat @ [Wr|Wg] = x@(W0+W3) + y@(W1-W3) + (x*y)@W2
    w = jnp.concatenate([w_r, w_g], axis=1).astype(jnp.float32)       # (8H, 4H)
    w0, w1, w2, w3 = (w[i * two_h:(i + 1) * two_h] for i in range(4))
    w01 = jnp.concatenate([w0 + w3, w1 - w3], axis=0).astype(dot_dtype)  # (4H,4H)
    w2 = w2.astype(dot_dtype)                                            # (2H,4H)
    b = jnp.concatenate([b_r, b_g], axis=1).astype(jnp.float32)          # (1, 4H)

    # Row tile: multiple of 8, clamped to the problem size for small M.
    tm_eff = _round_up(max(8, min(tm, _round_up(M, 8))), 8)
    grid = (pl.cdiv(M, tm_eff),)     # ragged tail handled by Pallas block masking

    row_spec = pl.BlockSpec((tm_eff, two_h), lambda i: (i, 0))
    w01_spec = pl.BlockSpec((four_h, four_h), lambda i: (0, 0))
    w2_spec = pl.BlockSpec((two_h, four_h), lambda i: (0, 0))
    b_spec = pl.BlockSpec((1, four_h), lambda i: (0, 0))

    if vmem_limit_bytes is None:
        # x, y, out tiles double-buffered + weights/bias (double-buffered by
        # default) + f32 intermediates (acc & friends), with 25% headroom,
        # floored at 8 MiB and capped at 48 MiB (v7x has 64 MiB per TC).
        row_io = 3 * 2 * tm_eff * two_h * x.dtype.itemsize
        wgt = 2 * (four_h * four_h + two_h * four_h) * jnp.dtype(dot_dtype).itemsize
        bias = 2 * four_h * 4
        scratch = 4 * tm_eff * four_h * 4
        needed = (row_io + wgt + bias + scratch) * 5 // 4
        vmem_limit_bytes = int(min(max(needed, 8 << 20), 48 << 20))

    return pl.pallas_call(
        functools.partial(fusion_kernel, two_h=two_h, dot_dtype=dot_dtype,
                          split_xy=split_xy_dots),
        out_shape=jax.ShapeDtypeStruct((M, two_h), x.dtype),
        grid_spec=pltpu.PrefetchScalarGridSpec(
            num_scalar_prefetch=0,
            grid=grid,
            in_specs=[row_spec, row_spec, w01_spec, w2_spec, b_spec],
            out_specs=row_spec,
        ),
        compiler_params=pltpu.CompilerParams(
            dimension_semantics=("parallel",),
            vmem_limit_bytes=vmem_limit_bytes),
    )(x, y, w01, w2, b)


def reference(x, y, w_r, b_r, w_g, b_g):
    feat = jnp.concatenate([x, y, x * y, x - y], axis=-1)
    r = _gelu_tanh(feat @ w_r + b_r)
    g = jax.nn.sigmoid(feat @ w_g + b_g)
    return g * r + (1.0 - g) * x


if __name__ == "__main__":
    hidden = 64                 # config['hidden_size']
    two_h = 2 * hidden          # 128  (feature dim of x, y — lane-dense)
    eight_h = 8 * hidden        # 512  (concat feature dim)
    batch, seq = 4, 128
    M = batch * seq             # 512 rows -> single grid step at tm=1024

    key = jax.random.PRNGKey(0)
    kx, ky, kwr, kbr, kwg, kbg = jax.random.split(key, 6)

    x = jax.random.normal(kx, (M, two_h), dtype=jnp.float32)
    y = jax.random.normal(ky, (M, two_h), dtype=jnp.float32)

    # deterministic "nn.Linear"-style params (stored pre-transposed: (in, out))
    bound = 1.0 / math.sqrt(eight_h)
    w_r = jax.random.uniform(kwr, (eight_h, two_h), jnp.float32, -bound, bound)
    b_r = jax.random.uniform(kbr, (1, two_h), jnp.float32, -bound, bound)
    w_g = jax.random.uniform(kwg, (eight_h, two_h), jnp.float32, -bound, bound)
    b_g = jax.random.uniform(kbg, (1, two_h), jnp.float32, -bound, bound)

    ref = reference(x, y, w_r, b_r, w_g, b_g)

    # f32 MXU path, merged K=4H dot (v6e/v7x): must match f32 reference tightly.
    out_f32 = jax.block_until_ready(fusion_block(x, y, w_r, b_r, w_g, b_g))
    assert out_f32.shape == (M, two_h)
    assert jnp.allclose(out_f32, ref, atol=1e-5, rtol=1e-5), "f32 merged mismatch"

    # f32 MXU path, split K=2H dots (v5e layout): also tight.
    out_split = jax.block_until_ready(
        fusion_block(x, y, w_r, b_r, w_g, b_g, split_xy_dots=True))
    assert jnp.allclose(out_split, ref, atol=1e-5, rtol=1e-5), "f32 split mismatch"

    # bf16 MXU-operand path; f32 accumulation keeps it close to the reference.
    out_bf16 = jax.block_until_ready(
        fusion_block(x, y, w_r, b_r, w_g, b_g, dot_dtype=jnp.bfloat16))
    assert jnp.allclose(out_bf16, ref, atol=5e-2, rtol=5e-2), "bf16 mismatch"

    # Ragged M (no wrapper-side padding): partial final row block is masked.
    Mr = 300
    xr, yr = x[:Mr], y[:Mr]
    out_ragged = jax.block_until_ready(
        fusion_block(xr, yr, w_r, b_r, w_g, b_g, tm=128))
    assert out_ragged.shape == (Mr, two_h)
    assert jnp.allclose(out_ragged, ref[:Mr], atol=1e-5, rtol=1e-5), "ragged mismatch"

    print("KERNEL_OK")
</pallas_src>

<mosaic_0001>
module attributes {stable_mosaic.version = 11 : i64} {
  func.func @fusion_kernel(%arg0: i32, %arg1: memref<512x128xf32, #tpu.memory_space<vmem>>, %arg2: memref<512x128xf32, #tpu.memory_space<vmem>>, %arg3: memref<256x256xf32, #tpu.memory_space<vmem>>, %arg4: memref<128x256xf32, #tpu.memory_space<vmem>>, %arg5: memref<1x256xf32, #tpu.memory_space<vmem>>, %arg6: memref<512x128xf32, #tpu.memory_space<vmem>>) attributes {dimension_semantics = [#tpu.dimension_semantics<parallel>], iteration_bounds = array<i64: 1>, scalar_prefetch = 0 : i64, scratch_operands = 0 : i64, tpu.core_type = #tpu.core_type<tc>, window_params = [{transform_indices = @transform_0, window_bounds = array<i64: 512, 128>}, {transform_indices = @transform_1, window_bounds = array<i64: 512, 128>}, {pipeline_mode = #tpu.pipeline_mode<synchronous>, transform_indices = @transform_2, window_bounds = array<i64: 256, 256>}, {pipeline_mode = #tpu.pipeline_mode<synchronous>, transform_indices = @transform_3, window_bounds = array<i64: 128, 256>}, {pipeline_mode = #tpu.pipeline_mode<synchronous>, transform_indices = @transform_4, window_bounds = array<i64: 1, 256>}, {transform_indices = @transform_5, window_bounds = array<i64: 512, 128>}]} {
    %c0 = arith.constant 0 : index
    %c0_0 = arith.constant 0 : index
    %0 = vector.load %arg1[%c0, %c0_0] : memref<512x128xf32, #tpu.memory_space<vmem>>, vector<512x128xf32>
    %c0_1 = arith.constant 0 : index
    %c0_2 = arith.constant 0 : index
    %1 = vector.load %arg2[%c0_1, %c0_2] : memref<512x128xf32, #tpu.memory_space<vmem>>, vector<512x128xf32>
    %2 = tpu.concatenate %0, %1 in 1 : vector<512x128xf32>, vector<512x128xf32> -> vector<512x256xf32>
    %c0_3 = arith.constant 0 : index
    %c0_4 = arith.constant 0 : index
    %3 = vector.load %arg3[%c0_3, %c0_4] : memref<256x256xf32, #tpu.memory_space<vmem>>, vector<256x256xf32>
    %cst = arith.constant dense<0.000000e+00> : vector<512x256xf32>
    %4 = tpu.matmul %2, %3, %cst {dimension_numbers = #tpu.dot_dimension_numbers<[1], [0], [0], [1], [0, 0, 1, 1], [], []>} : vector<512x256xf32>, vector<256x256xf32>, vector<512x256xf32> -> vector<512x256xf32>
    %5 = arith.mulf %0, %1 : vector<512x128xf32>
    %c0_5 = arith.constant 0 : index
    %c0_6 = arith.constant 0 : index
    %6 = vector.load %arg4[%c0_5, %c0_6] : memref<128x256xf32, #tpu.memory_space<vmem>>, vector<128x256xf32>
    %cst_7 = arith.constant dense<0.000000e+00> : vector<512x256xf32>
    %7 = tpu.matmul %5, %6, %cst_7 {dimension_numbers = #tpu.dot_dimension_numbers<[1], [0], [0], [1], [0, 0, 1, 1], [], []>} : vector<512x128xf32>, vector<128x256xf32>, vector<512x256xf32> -> vector<512x256xf32>
    %8 = arith.addf %4, %7 : vector<512x256xf32>
    %c0_8 = arith.constant 0 : index
    %c0_9 = arith.constant 0 : index
    %9 = vector.load %arg5[%c0_8, %c0_9] : memref<1x256xf32, #tpu.memory_space<vmem>>, vector<1x256xf32>
    %10 = vector.broadcast %9 : vector<1x256xf32> to vector<512x256xf32>
    %11 = arith.addf %8, %10 : vector<512x256xf32>
    %12 = vector.extract_strided_slice %11 {offsets = [0, 0], sizes = [512, 128], strides = [1, 1]} : vector<512x256xf32> to vector<512x128xf32>
    %cst_10 = arith.constant 5.000000e-01 : f32
    %13 = vector.broadcast %cst_10 : f32 to vector<512x128xf32>
    %14 = arith.mulf %13, %12 : vector<512x128xf32>
    %15 = arith.mulf %12, %12 : vector<512x128xf32>
    %16 = arith.mulf %15, %12 : vector<512x128xf32>
    %cst_11 = arith.constant 4.471500e-02 : f32
    %17 = vector.broadcast %cst_11 : f32 to vector<512x128xf32>
    %18 = arith.mulf %17, %16 : vector<512x128xf32>
    %19 = arith.addf %12, %18 : vector<512x128xf32>
    %cst_12 = arith.constant 0.797884583 : f32
    %20 = vector.broadcast %cst_12 : f32 to vector<512x128xf32>
    %21 = arith.mulf %20, %19 : vector<512x128xf32>
    %22 = math.tanh %21 : vector<512x128xf32>
    %cst_13 = arith.constant 1.000000e+00 : f32
    %23 = vector.broadcast %cst_13 : f32 to vector<512x128xf32>
    %24 = arith.addf %23, %22 : vector<512x128xf32>
    %25 = arith.mulf %14, %24 : vector<512x128xf32>
    %26 = vector.extract_strided_slice %11 {offsets = [0, 128], sizes = [512, 128], strides = [1, 1]} : vector<512x256xf32> to vector<512x128xf32>
    %27 = arith.negf %26 : vector<512x128xf32>
    %28 = math.exp %27 : vector<512x128xf32>
    %cst_14 = arith.constant 1.000000e+00 : f32
    %29 = vector.broadcast %cst_14 : f32 to vector<512x128xf32>
    %30 = arith.addf %29, %28 : vector<512x128xf32>
    %31 = arith.divf %29, %30 : vector<512x128xf32>
    %32 = arith.subf %25, %0 : vector<512x128xf32>
    %33 = arith.mulf %31, %32 : vector<512x128xf32>
    %34 = arith.addf %0, %33 : vector<512x128xf32>
    %c0_15 = arith.constant 0 : index
    %c0_16 = arith.constant 0 : index
    %35 = vector.load %arg6[%c0_15, %c0_16] : memref<512x128xf32, #tpu.memory_space<vmem>>, vector<512x128xf32>
    tpu.vector_store %arg6[%c0_15, %c0_16], %34 {strides = array<i32>} : memref<512x128xf32, #tpu.memory_space<vmem>>, vector<512x128xf32>,
    return
  }
  func.func @transform_0(%arg0: i32) -> (i32, i32) {
    %c0_i32 = arith.constant 0 : i32
    %c0_i32_0 = arith.constant 0 : i32
    return %arg0, %c0_i32 : i32, i32
  }
  func.func @transform_1(%arg0: i32) -> (i32, i32) {
    %c0_i32 = arith.constant 0 : i32
    %c0_i32_0 = arith.constant 0 : i32
    return %arg0, %c0_i32 : i32, i32
  }
  func.func @transform_2(%arg0: i32) -> (i32, i32) {
    %c0_i32 = arith.constant 0 : i32
    %c0_i32_0 = arith.constant 0 : i32
    %c0_i32_1 = arith.constant 0 : i32
    return %c0_i32, %c0_i32_0 : i32, i32
  }
  func.func @transform_3(%arg0: i32) -> (i32, i32) {
    %c0_i32 = arith.constant 0 : i32
    %c0_i32_0 = arith.constant 0 : i32
    %c0_i32_1 = arith.constant 0 : i32
    return %c0_i32, %c0_i32_0 : i32, i32
  }
  func.func @transform_4(%arg0: i32) -> (i32, i32) {
    %c0_i32 = arith.constant 0 : i32
    %c0_i32_0 = arith.constant 0 : i32
    %c0_i32_1 = arith.constant 0 : i32
    return %c0_i32, %c0_i32_0 : i32, i32
  }
  func.func @transform_5(%arg0: i32) -> (i32, i32) {
    %c0_i32 = arith.constant 0 : i32
    %c0_i32_0 = arith.constant 0 : i32
    return %arg0, %c0_i32 : i32, i32
  }
}

</mosaic_0001>

<llo_original>
// kernel: tpu_custom_call.1
$region0: #{tpu_custom_call.1}
  #allocation0 [shape = 'u32[]', space=smem, size = 0x4, offset = 0x4, fixed_abs, tag = 'smem constant byte address 0x4 - core index']
  #allocation1 [shape = 'u32[144,128]{1,0:T(1,128)}', space=vmem, size = 0x12000, scoped, tag = 'internal scratch']
  %s0 = inlined_call_operand.hbm [shape: f32[512,128], index: 0, kind: input, shape index: {}]
  %s1 = inlined_call_operand.hbm [shape: f32[512,128], index: 1, kind: input, shape index: {}]
  %s2 = inlined_call_operand.hbm [shape: f32[256,256], index: 2, kind: input, shape index: {}]
  %s3 = inlined_call_operand.hbm [shape: f32[128,256], index: 3, kind: input, shape index: {}]
  %s4 = inlined_call_operand.vmem [shape: f32[1,256], index: 4, kind: input, shape index: {}]
  %s5 = inlined_call_operand.hbm [shape: f32[512,128], index: 5, kind: output, shape index: {}]
  %s6 = sld [smem:[#allocation0]]
  $region46: #{tpu_custom_call.1} parent=0
    _
  %s8 = ssub.s32 1, %s6
  %s9 = scalar_select 0, %s8, %s6
  $region1: #{tpu_custom_call.1} parent=0
    #allocation2 [shape = 'u8[262144]{0}', space=vmem, size = 0x40000, scoped, tag = 'input window, operand 0, single buffered']
    #allocation3 [shape = 's32[1]{0}', space=sflag, size = 0x4, scoped, tag = 'scoped memory for tpu_custom_call.1']
    #allocation4 [shape = 's32[1]{0}', space=sflag, size = 0x4, scoped, tag = 'scoped memory for tpu_custom_call.1']
    #allocation5 [shape = 'u8[262144]{0}', space=vmem, size = 0x40000, scoped, tag = 'input window, operand 1, single buffered']
    #allocation6 [shape = 's32[1]{0}', space=sflag, size = 0x4, scoped, tag = 'scoped memory for tpu_custom_call.1']
    #allocation7 [shape = 'u8[262144]{0}', space=vmem, size = 0x40000, scoped, tag = 'input window, operand 2, single buffered']
    #allocation8 [shape = 'u8[131072]{0}', space=vmem, size = 0x20000, scoped, tag = 'input window, operand 3, single buffered']
    #allocation9 [shape = 's32[1]{0}', space=sflag, size = 0x4, scoped, tag = 'scoped memory for tpu_custom_call.1']
    #allocation10 [shape = 'u8[262144]{0}', space=vmem, size = 0x40000, scoped, tag = 'output window, operand 0, single buffered']
    %10 = vsyncpa [#allocation3], 0
    %11 = vsyncpa [#allocation6], 0
    %12 = vsyncpa [#allocation9], 0
    %13 = vsyncpa [#allocation4], 0
    // Predicated region
    $region2: #{tpu_custom_call.1} parent=1 // pred_check
      _
    $region3: #{tpu_custom_call.1} parent=1 // pred_check_branch
      %15 = sbr.rel (0) target = $region5
    $region4: #{tpu_custom_call.1} parent=1 // pred_region
      %s17 = ssub.s32 8192, 8192
      %18 = vsyncadd [#allocation3], %s17
      %s19 = sshll.u32 [#allocation2], 4
      %s20 = int_to_ptr.vmem [resolvable:$true] %s19
      %25 = dma.hbm_to_vmem [thread:$0]  %s0, 8192, %s20, [#allocation3], 128, 128, 8
    $region5: #{tpu_custom_call.1} parent=1 // pred_fallthru
      _
    // Predicated region
    $region6: #{tpu_custom_call.1} parent=1 // pred_check
      _
    $region7: #{tpu_custom_call.1} parent=1 // pred_check_branch
      %27 = sbr.rel (0) target = $region9
    $region8: #{tpu_custom_call.1} parent=1 // pred_region
      %s29 = ssub.s32 8192, 8192
      %30 = vsyncadd [#allocation6], %s29
      %s31 = sshll.u32 [#allocation5], 4
      %s32 = int_to_ptr.vmem [resolvable:$true] %s31
      %37 = dma.hbm_to_vmem [thread:$0]  %s1, 8192, %s32, [#allocation6], 128, 128, 8
    $region9: #{tpu_custom_call.1} parent=1 // pred_fallthru
      _
    // Predicated region
    $region10: #{tpu_custom_call.1} parent=1 // pred_check
      _
    $region11: #{tpu_custom_call.1} parent=1 // pred_check_branch
      %39 = sbr.rel (0) target = $region13
    $region12: #{tpu_custom_call.1} parent=1 // pred_region
      %s41 = ssub.s32 8192, 8192
      %42 = vsyncadd [#allocation6], %s41
      %s43 = sshll.u32 [#allocation7], 4
      %s44 = int_to_ptr.vmem [resolvable:$true] %s43
      %49 = dma.hbm_to_vmem [thread:$0]  %s2, 8192, %s44, [#allocation6], 256, 256, 16
    $region13: #{tpu_custom_call.1} parent=1 // pred_fallthru
      _
    // Predicated region
    $region14: #{tpu_custom_call.1} parent=1 // pred_check
      _
    $region15: #{tpu_custom_call.1} parent=1 // pred_check_branch
      %51 = sbr.rel (0) target = $region17
    $region16: #{tpu_custom_call.1} parent=1 // pred_region
      %s53 = ssub.s32 4096, 4096
      %54 = vsyncadd [#allocation9], %s53
      %s55 = sshll.u32 [#allocation8], 4
      %s56 = int_to_ptr.vmem [resolvable:$true] %s55
      %61 = dma.hbm_to_vmem [thread:$0]  %s3, 4096, %s56, [#allocation9], 256, 256, 16
    $region17: #{tpu_custom_call.1} parent=1 // pred_fallthru
      _
    // Predicated region
    $region18: #{tpu_custom_call.1} parent=1 // pred_check
      _
    $region19: #{tpu_custom_call.1} parent=1 // pred_check_branch
      %63 = sbr.rel (0) target = $region21
    $region20: #{tpu_custom_call.1} parent=1 // pred_region
      _
    $region21: #{tpu_custom_call.1} parent=1 // pred_fallthru
      _
    // Predicated region
    $region22: #{tpu_custom_call.1} parent=1 // pred_check
      _
    $region23: #{tpu_custom_call.1} parent=1 // pred_check_branch
      %65 = sbr.rel (0) target = $region25
    $region24: #{tpu_custom_call.1} parent=1 // pred_region
      %66 = dma.done [#allocation3], 8192
    $region25: #{tpu_custom_call.1} parent=1 // pred_fallthru
      _
    // Predicated region
    $region26: #{tpu_custom_call.1} parent=1 // pred_check
      _
    $region27: #{tpu_custom_call.1} parent=1 // pred_check_branch
      %68 = sbr.rel (0) target = $region29
    $region28: #{tpu_custom_call.1} parent=1 // pred_region
      %69 = dma.done [#allocation6], 8192
    $region29: #{tpu_custom_call.1} parent=1 // pred_fallthru
      _
    // Predicated region
    $region30: #{tpu_custom_call.1} parent=1 // pred_check
      _
    $region31: #{tpu_custom_call.1} parent=1 // pred_check_branch
      %71 = sbr.rel (0) target = $region33
    $region32: #{tpu_custom_call.1} parent=1 // pred_region
      %72 = dma.done [#allocation6], 8192
    $region33: #{tpu_custom_call.1} parent=1 // pred_fallthru
      _
    // Predicated region
    $region34: #{tpu_custom_call.1} parent=1 // pred_check
      _
    $region35: #{tpu_custom_call.1} parent=1 // pred_check_branch
      %74 = sbr.rel (0) target = $region37
    $region36: #{tpu_custom_call.1} parent=1 // pred_region
      %75 = dma.done [#allocation9], 4096
    $region37: #{tpu_custom_call.1} parent=1 // pred_fallthru
      _
    %v76 = vld [vmem:[#allocation2] sm:$0xff]
    %v77 = vld [vmem:[#allocation2 + $0x8] sm:$0xff]
    %v78 = vld [vmem:[#allocation2 + $0x10] sm:$0xff]
    %v79 = vld [vmem:[#allocation2 + $0x18] sm:$0xff]
    %v80 = vld [vmem:[#allocation2 + $0x20] sm:$0xff]
    %v81 = vld [vmem:[#allocation2 + $0x28] sm:$0xff]
    %v82 = vld [vmem:[#allocation2 + $0x30] sm:$0xff]
    %v83 = vld [vmem:[#allocation2 + $0x38] sm:$0xff]
    %v84 = vld [vmem:[#allocation2 + $0x40] sm:$0xff]
    %v85 = vld [vmem:[#allocation2 + $0x48] sm:$0xff]
    %v86 = vld [vmem:[#allocation2 + $0x50] sm:$0xff]
    %v87 = vld [vmem:[#allocation2 + $0x58] sm:$0xff]
    %v88 = vld [vmem:[#allocation2 + $0x60] sm:$0xff]
    %v89 = vld [vmem:[#allocation2 + $0x68] sm:$0xff]
    %v90 = vld [vmem:[#allocation2 + $0x70] sm:$0xff]
    %v91 = vld [vmem:[#allocation2 + $0x78] sm:$0xff]
    %v92 = vld [vmem:[#allocation2 + $0x80] sm:$0xff]
    %v93 = vld [vmem:[#allocation2 + $0x88] sm:$0xff]
    %v94 = vld [vmem:[#allocation2 + $0x90] sm:$0xff]
    %v95 = vld [vmem:[#allocation2 + $0x98] sm:$0xff]
    %v96 = vld [vmem:[#allocation2 + $0xa0] sm:$0xff]
    %v97 = vld [vmem:[#allocation2 + $0xa8] sm:$0xff]
    %v98 = vld [vmem:[#allocation2 + $0xb0] sm:$0xff]
    %v99 = vld [vmem:[#allocation2 + $0xb8] sm:$0xff]
    %v100 = vld [vmem:[#allocation2 + $0xc0] sm:$0xff]
    %v101 = vld [vmem:[#allocation2 + $0xc8] sm:$0xff]
    %v102 = vld [vmem:[#allocation2 + $0xd0] sm:$0xff]
    %v103 = vld [vmem:[#allocation2 + $0xd8] sm:$0xff]
    %v104 = vld [vmem:[#allocation2 + $0xe0] sm:$0xff]
    %v105 = vld [vmem:[#allocation2 + $0xe8] sm:$0xff]
    %v106 = vld [vmem:[#allocation2 + $0xf0] sm:$0xff]
    %v107 = vld [vmem:[#allocation2 + $0xf8] sm:$0xff]
    %v108 = vld [vmem:[#allocation2 + $0x100] sm:$0xff]
    %v109 = vld [vmem:[#allocation2 + $0x108] sm:$0xff]
    %v110 = vld [vmem:[#allocation2 + $0x110] sm:$0xff]
    %v111 = vld [vmem:[#allocation2 + $0x118] sm:$0xff]
    %v112 = vld [vmem:[#allocation2 + $0x120] sm:$0xff]
    %v113 = vld [vmem:[#allocation2 + $0x128] sm:$0xff]
    %v114 = vld [vmem:[#allocation2 + $0x130] sm:$0xff]
    %v115 = vld [vmem:[#allocation2 + $0x138] sm:$0xff]
    %v116 = vld [vmem:[#allocation2 + $0x140] sm:$0xff]
    %v117 = vld [vmem:[#allocation2 + $0x148] sm:$0xff]
    %v118 = vld [vmem:[#allocation2 + $0x150] sm:$0xff]
    %v119 = vld [vmem:[#allocation2 + $0x158] sm:$0xff]
    %v120 = vld [vmem:[#allocation2 + $0x160] sm:$0xff]
    %v121 = vld [vmem:[#allocation2 + $0x168] sm:$0xff]
    %v122 = vld [vmem:[#allocation2 + $0x170] sm:$0xff]
    %v123 = vld [vmem:[#allocation2 + $0x178] sm:$0xff]
    %v124 = vld [vmem:[#allocation2 + $0x180] sm:$0xff]
    %v125 = vld [vmem:[#allocation2 + $0x188] sm:$0xff]
    %v126 = vld [vmem:[#allocation2 + $0x190] sm:$0xff]
    %v127 = vld [vmem:[#allocation2 + $0x198] sm:$0xff]
    %v128 = vld [vmem:[#allocation2 + $0x1a0] sm:$0xff]
    %v129 = vld [vmem:[#allocation2 + $0x1a8] sm:$0xff]
    %v130 = vld [vmem:[#allocation2 + $0x1b0] sm:$0xff]
    %v131 = vld [vmem:[#allocation2 + $0x1b8] sm:$0xff]
    %v132 = vld [vmem:[#allocation2 + $0x1c0] sm:$0xff]
    %v133 = vld [vmem:[#allocation2 + $0x1c8] sm:$0xff]
    %v134 = vld [vmem:[#allocation2 + $0x1d0] sm:$0xff]
    %v135 = vld [vmem:[#allocation2 + $0x1d8] sm:$0xff]
    %v136 = vld [vmem:[#allocation2 + $0x1e0] sm:$0xff]
    %v137 = vld [vmem:[#allocation2 + $0x1e8] sm:$0xff]
    %v138 = vld [vmem:[#allocation2 + $0x1f0] sm:$0xff]
    %v139 = vld [vmem:[#allocation2 + $0x1f8] sm:$0xff]
    %v140 = vld [vmem:[#allocation5] sm:$0xff]
    %v141 = vld [vmem:[#allocation5 + $0x8] sm:$0xff]
    %v142 = vld [vmem:[#allocation5 + $0x10] sm:$0xff]
    %v143 = vld [vmem:[#allocation5 + $0x18] sm:$0xff]
    %v144 = vld [vmem:[#allocation5 + $0x20] sm:$0xff]
    %v145 = vld [vmem:[#allocation5 + $0x28] sm:$0xff]
    %v146 = vld [vmem:[#allocation5 + $0x30] sm:$0xff]
    %v147 = vld [vmem:[#allocation5 + $0x38] sm:$0xff]
    %v148 = vld [vmem:[#allocation5 + $0x40] sm:$0xff]
    %v149 = vld [vmem:[#allocation5 + $0x48] sm:$0xff]
    %v150 = vld [vmem:[#allocation5 + $0x50] sm:$0xff]
    %v151 = vld [vmem:[#allocation5 + $0x58] sm:$0xff]
    %v152 = vld [vmem:[#allocation5 + $0x60] sm:$0xff]
    %v153 = vld [vmem:[#allocation5 + $0x68] sm:$0xff]
    %v154 = vld [vmem:[#allocation5 + $0x70] sm:$0xff]
    %v155 = vld [vmem:[#allocation5 + $0x78] sm:$0xff]
    %v156 = vld [vmem:[#allocation5 + $0x80] sm:$0xff]
    %v157 = vld [vmem:[#allocation5 + $0x88] sm:$0xff]
    %v158 = vld [vmem:[#allocation5 + $0x90] sm:$0xff]
    %v159 = vld [vmem:[#allocation5 + $0x98] sm:$0xff]
    %v160 = vld [vmem:[#allocation5 + $0xa0] sm:$0xff]
    %v161 = vld [vmem:[#allocation5 + $0xa8] sm:$0xff]
    %v162 = vld [vmem:[#allocation5 + $0xb0] sm:$0xff]
    %v163 = vld [vmem:[#allocation5 + $0xb8] sm:$0xff]
    %v164 = vld [vmem:[#allocation5 + $0xc0] sm:$0xff]
    %v165 = vld [vmem:[#allocation5 + $0xc8] sm:$0xff]
    %v166 = vld [vmem:[#allocation5 + $0xd0] sm:$0xff]
    %v167 = vld [vmem:[#allocation5 + $0xd8] sm:$0xff]
    %v168 = vld [vmem:[#allocation5 + $0xe0] sm:$0xff]
    %v169 = vld [vmem:[#allocation5 + $0xe8] sm:$0xff]
    %v170 = vld [vmem:[#allocation5 + $0xf0] sm:$0xff]
    %v171 = vld [vmem:[#allocation5 + $0xf8] sm:$0xff]
    %v172 = vld [vmem:[#allocation5 + $0x100] sm:$0xff]
    %v173 = vld [vmem:[#allocation5 + $0x108] sm:$0xff]
    %v174 = vld [vmem:[#allocation5 + $0x110] sm:$0xff]
    %v175 = vld [vmem:[#allocation5 + $0x118] sm:$0xff]
    %v176 = vld [vmem:[#allocation5 + $0x120] sm:$0xff]
    %v177 = vld [vmem:[#allocation5 + $0x128] sm:$0xff]
    %v178 = vld [vmem:[#allocation5 + $0x130] sm:$0xff]
    %v179 = vld [vmem:[#allocation5 + $0x138] sm:$0xff]
    %v180 = vld [vmem:[#allocation5 + $0x140] sm:$0xff]
    %v181 = vld [vmem:[#allocation5 + $0x148] sm:$0xff]
    %v182 = vld [vmem:[#allocation5 + $0x150] sm:$0xff]
    %v183 = vld [vmem:[#allocation5 + $0x158] sm:$0xff]
    %v184 = vld [vmem:[#allocation5 + $0x160] sm:$0xff]
    %v185 = vld [vmem:[#allocation5 + $0x168] sm:$0xff]
    %v186 = vld [vmem:[#allocation5 + $0x170] sm:$0xff]
    %v187 = vld [vmem:[#allocation5 + $0x178] sm:$0xff]
    %v188 = vld [vmem:[#allocation5 + $0x180] sm:$0xff]
    %v189 = vld [vmem:[#allocation5 + $0x188] sm:$0xff]
    %v190 = vld [vmem:[#allocation5 + $0x190] sm:$0xff]
    %v191 = vld [vmem:[#allocation5 + $0x198] sm:$0xff]
    %v192 = vld [vmem:[#allocation5 + $0x1a0] sm:$0xff]
    %v193 = vld [vmem:[#allocation5 + $0x1a8] sm:$0xff]
    %v194 = vld [vmem:[#allocation5 + $0x1b0] sm:$0xff]
    %v195 = vld [vmem:[#allocation5 + $0x1b8] sm:$0xff]
    %v196 = vld [vmem:[#allocation5 + $0x1c0] sm:$0xff]
    %v197 = vld [vmem:[#allocation5 + $0x1c8] sm:$0xff]
    %v198 = vld [vmem:[#allocation5 + $0x1d0] sm:$0xff]
    %v199 = vld [vmem:[#allocation5 + $0x1d8] sm:$0xff]
    %v200 = vld [vmem:[#allocation5 + $0x1e0] sm:$0xff]
    %v201 = vld [vmem:[#allocation5 + $0x1e8] sm:$0xff]
    %v202 = vld [vmem:[#allocation5 + $0x1f0] sm:$0xff]
    %v203 = vld [vmem:[#allocation5 + $0x1f8] sm:$0xff]
    %v204 = vld [vmem:[#allocation7] sm:$0xff]
    %v205 = vld [vmem:[#allocation7 + $0x8] sm:$0xff]
    %v206 = vld [vmem:[#allocation7 + $0x10] sm:$0xff]
    %v207 = vld [vmem:[#allocation7 + $0x18] sm:$0xff]
    %v208 = vld [vmem:[#allocation7 + $0x20] sm:$0xff]
    %v209 = vld [vmem:[#allocation7 + $0x28] sm:$0xff]
    %v210 = vld [vmem:[#allocation7 + $0x30] sm:$0xff]
    %v211 = vld [vmem:[#allocation7 + $0x38] sm:$0xff]
    %v212 = vld [vmem:[#allocation7 + $0x40] sm:$0xff]
    %v213 = vld [vmem:[#allocation7 + $0x48] sm:$0xff]
    %v214 = vld [vmem:[#allocation7 + $0x50] sm:$0xff]
    %v215 = vld [vmem:[#allocation7 + $0x58] sm:$0xff]
    %v216 = vld [vmem:[#allocation7 + $0x60] sm:$0xff]
    %v217 = vld [vmem:[#allocation7 + $0x68] sm:$0xff]
    %v218 = vld [vmem:[#allocation7 + $0x70] sm:$0xff]
    %v219 = vld [vmem:[#allocation7 + $0x78] sm:$0xff]
    %v220 = vld [vmem:[#allocation7 + $0x80] sm:$0xff]
    %v221 = vld [vmem:[#allocation7 + $0x88] sm:$0xff]
    %v222 = vld [vmem:[#allocation7 + $0x90] sm:$0xff]
    %v223 = vld [vmem:[#allocation7 + $0x98] sm:$0xff]
    %v224 = vld [vmem:[#allocation7 + $0xa0] sm:$0xff]
    %v225 = vld [vmem:[#allocation7 + $0xa8] sm:$0xff]
    %v226 = vld [vmem:[#allocation7 + $0xb0] sm:$0xff]
    %v227 = vld [vmem:[#allocation7 + $0xb8] sm:$0xff]
    %v228 = vld [vmem:[#allocation7 + $0xc0] sm:$0xff]
    %v229 = vld [vmem:[#allocation7 + $0xc8] sm:$0xff]
    %v230 = vld [vmem:[#allocation7 + $0xd0] sm:$0xff]
    %v231 = vld [vmem:[#allocation7 + $0xd8] sm:$0xff]
    %v232 = vld [vmem:[#allocation7 + $0xe0] sm:$0xff]
    %v233 = vld [vmem:[#allocation7 + $0xe8] sm:$0xff]
    %v234 = vld [vmem:[#allocation7 + $0xf0] sm:$0xff]
    %v235 = vld [vmem:[#allocation7 + $0xf8] sm:$0xff]
    %v236 = vld [vmem:[#allocation7 + $0x100] sm:$0xff]
    %v237 = vld [vmem:[#allocation7 + $0x108] sm:$0xff]
    %v238 = vld [vmem:[#allocation7 + $0x110] sm:$0xff]
    %v239 = vld [vmem:[#allocation7 + $0x118] sm:$0xff]
    %v240 = vld [vmem:[#allocation7 + $0x120] sm:$0xff]
    %v241 = vld [vmem:[#allocation7 + $0x128] sm:$0xff]
    %v242 = vld [vmem:[#allocation7 + $0x130] sm:$0xff]
    %v243 = vld [vmem:[#allocation7 + $0x138] sm:$0xff]
    %v244 = vld [vmem:[#allocation7 + $0x140] sm:$0xff]
    %v245 = vld [vmem:[#allocation7 + $0x148] sm:$0xff]
    %v246 = vld [vmem:[#allocation7 + $0x150] sm:$0xff]
    %v247 = vld [vmem:[#allocation7 + $0x158] sm:$0xff]
    %v248 = vld [vmem:[#allocation7 + $0x160] sm:$0xff]
    %v249 = vld [vmem:[#allocation7 + $0x168] sm:$0xff]
    %v250 = vld [vmem:[#allocation7 + $0x170] sm:$0xff]
    %v251 = vld [vmem:[#allocation7 + $0x178] sm:$0xff]
    %v252 = vld [vmem:[#allocation7 + $0x180] sm:$0xff]
    %v253 = vld [vmem:[#allocation7 + $0x188] sm:$0xff]
    %v254 = vld [vmem:[#allocation7 + $0x190] sm:$0xff]
    %v255 = vld [vmem:[#allocation7 + $0x198] sm:$0xff]
    %v256 = vld [vmem:[#allocation7 + $0x1a0] sm:$0xff]
    %v257 = vld [vmem:[#allocation7 + $0x1a8] sm:$0xff]
    %v258 = vld [vmem:[#allocation7 + $0x1b0] sm:$0xff]
    %v259 = vld [vmem:[#allocation7 + $0x1b8] sm:$0xff]
    %v260 = vld [vmem:[#allocation7 + $0x1c0] sm:$0xff]
    %v261 = vld [vmem:[#allocation7 + $0x1c8] sm:$0xff]
    %v262 = vld [vmem:[#allocation7 + $0x1d0] sm:$0xff]
    %v263 = vld [vmem:[#allocation7 + $0x1d8] sm:$0xff]
    %v264 = vld [vmem:[#allocation7 + $0x1e0] sm:$0xff]
    %v265 = vld [vmem:[#allocation7 + $0x1e8] sm:$0xff]
    %v266 = vld [vmem:[#allocation7 + $0x1f0] sm:$0xff]
    %v267 = vld [vmem:[#allocation7 + $0x1f8] sm:$0xff]
    %v268 = vmul.f32 %v76, %v140
    %v269 = vmul.f32 %v77, %v141
    %v270 = vmul.f32 %v78, %v142
    %v271 = vmul.f32 %v79, %v143
    %v272 = vmul.f32 %v80, %v144
    %v273 = vmul.f32 %v81, %v145
    %v274 = vmul.f32 %v82, %v146
    %v275 = vmul.f32 %v83, %v147
    %v276 = vmul.f32 %v84, %v148
    %v277 = vmul.f32 %v85, %v149
    %v278 = vmul.f32 %v86, %v150
    %v279 = vmul.f32 %v87, %v151
    %v280 = vmul.f32 %v88, %v152
    %v281 = vmul.f32 %v89, %v153
    %v282 = vmul.f32 %v90, %v154
    %v283 = vmul.f32 %v91, %v155
    %v284 = vmul.f32 %v92, %v156
    %v285 = vmul.f32 %v93, %v157
    %v286 = vmul.f32 %v94, %v158
    %v287 = vmul.f32 %v95, %v159
    %v288 = vmul.f32 %v96, %v160
    %v289 = vmul.f32 %v97, %v161
    %v290 = vmul.f32 %v98, %v162
    %v291 = vmul.f32 %v99, %v163
    %v292 = vmul.f32 %v100, %v164
    %v293 = vmul.f32 %v101, %v165
    %v294 = vmul.f32 %v102, %v166
    %v295 = vmul.f32 %v103, %v167
    %v296 = vmul.f32 %v104, %v168
    %v297 = vmul.f32 %v105, %v169
    %v298 = vmul.f32 %v106, %v170
    %v299 = vmul.f32 %v107, %v171
    %v300 = vmul.f32 %v108, %v172
    %v301 = vmul.f32 %v109, %v173
    %v302 = vmul.f32 %v110, %v174
    %v303 = vmul.f32 %v111, %v175
    %v304 = vmul.f32 %v112, %v176
    %v305 = vmul.f32 %v113, %v177
    %v306 = vmul.f32 %v114, %v178
    %v307 = vmul.f32 %v115, %v179
    %v308 = vmul.f32 %v116, %v180
    %v309 = vmul.f32 %v117, %v181
    %v310 = vmul.f32 %v118, %v182
    %v311 = vmul.f32 %v119, %v183
    %v312 = vmul.f32 %v120, %v184
    %v313 = vmul.f32 %v121, %v185
    %v314 = vmul.f32 %v122, %v186
    %v315 = vmul.f32 %v123, %v187
    %v316 = vmul.f32 %v124, %v188
    %v317 = vmul.f32 %v125, %v189
    %v318 = vmul.f32 %v126, %v190
    %v319 = vmul.f32 %v127, %v191
    %v320 = vmul.f32 %v128, %v192
    %v321 = vmul.f32 %v129, %v193
    %v322 = vmul.f32 %v130, %v194
    %v323 = vmul.f32 %v131, %v195
    %v324 = vmul.f32 %v132, %v196
    %v325 = vmul.f32 %v133, %v197
    %v326 = vmul.f32 %v134, %v198
    %v327 = vmul.f32 %v135, %v199
    %v328 = vmul.f32 %v136, %v200
    %v329 = vmul.f32 %v137, %v201
    %v330 = vmul.f32 %v138, %v202
    %v331 = vmul.f32 %v139, %v203
    %v332 = vld [vmem:[#allocation8] sm:$0xff]
    %v333 = vld [vmem:[#allocation8 + $0x8] sm:$0xff]
    %v334 = vld [vmem:[#allocation8 + $0x10] sm:$0xff]
    %v335 = vld [vmem:[#allocation8 + $0x18] sm:$0xff]
    %v336 = vld [vmem:[#allocation8 + $0x20] sm:$0xff]
    %v337 = vld [vmem:[#allocation8 + $0x28] sm:$0xff]
    %v338 = vld [vmem:[#allocation8 + $0x30] sm:$0xff]
    %v339 = vld [vmem:[#allocation8 + $0x38] sm:$0xff]
    %v340 = vld [vmem:[#allocation8 + $0x40] sm:$0xff]
    %v341 = vld [vmem:[#allocation8 + $0x48] sm:$0xff]
    %v342 = vld [vmem:[#allocation8 + $0x50] sm:$0xff]
    %v343 = vld [vmem:[#allocation8 + $0x58] sm:$0xff]
    %v344 = vld [vmem:[#allocation8 + $0x60] sm:$0xff]
    %v345 = vld [vmem:[#allocation8 + $0x68] sm:$0xff]
    %v346 = vld [vmem:[#allocation8 + $0x70] sm:$0xff]
    %v347 = vld [vmem:[#allocation8 + $0x78] sm:$0xff]
    %v348 = vld [vmem:[#allocation8 + $0x80] sm:$0xff]
    %v349 = vld [vmem:[#allocation8 + $0x88] sm:$0xff]
    %v350 = vld [vmem:[#allocation8 + $0x90] sm:$0xff]
    %v351 = vld [vmem:[#allocation8 + $0x98] sm:$0xff]
    %v352 = vld [vmem:[#allocation8 + $0xa0] sm:$0xff]
    %v353 = vld [vmem:[#allocation8 + $0xa8] sm:$0xff]
    %v354 = vld [vmem:[#allocation8 + $0xb0] sm:$0xff]
    %v355 = vld [vmem:[#allocation8 + $0xb8] sm:$0xff]
    %v356 = vld [vmem:[#allocation8 + $0xc0] sm:$0xff]
    %v357 = vld [vmem:[#allocation8 + $0xc8] sm:$0xff]
    %v358 = vld [vmem:[#allocation8 + $0xd0] sm:$0xff]
    %v359 = vld [vmem:[#allocation8 + $0xd8] sm:$0xff]
    %v360 = vld [vmem:[#allocation8 + $0xe0] sm:$0xff]
    %v361 = vld [vmem:[#allocation8 + $0xe8] sm:$0xff]
    %v362 = vld [vmem:[#allocation8 + $0xf0] sm:$0xff]
    %v363 = vld [vmem:[#allocation8 + $0xf8] sm:$0xff]
    %364 = vmatprep.subr.mxu0 %v333
    %365 = vmatpush1.msra.mxu0 %v332
    %366 = vmatprep.subr.mxu0 %v335
    %367 = vmatpush1.msra.mxu0 %v334
    %368 = vmatprep.subr.mxu0 %v337
    %369 = vmatpush1.msra.mxu0 %v336
    %370 = vmatprep.subr.mxu0 %v339
    %371 = vmatpush1.msra.mxu0 %v338
    %372 = vmatprep.subr.mxu0 %v341
    %373 = vmatpush1.msra.mxu0 %v340
    %374 = vmatprep.subr.mxu0 %v343
    %375 = vmatpush1.msra.mxu0 %v342
    %376 = vmatprep.subr.mxu0 %v345
    %377 = vmatpush1.msra.mxu0 %v344
    %378 = vmatprep.subr.mxu0 %v347
    %379 = vmatpush1.msra.mxu0 %v346
    %380 = vmatprep.subr.mxu0 %v349
    %381 = vmatpush1.msra.mxu0 %v348
    %382 = vmatprep.subr.mxu0 %v351
    %383 = vmatpush1.msra.mxu0 %v350
    %384 = vmatprep.subr.mxu0 %v353
    %385 = vmatpush1.msra.mxu0 %v352
    %386 = vmatprep.subr.mxu0 %v355
    %387 = vmatpush1.msra.mxu0 %v354
    %388 = vmatprep.subr.mxu0 %v357
    %389 = vmatpush1.msra.mxu0 %v356
    %390 = vmatprep.subr.mxu0 %v359
    %391 = vmatpush1.msra.mxu0 %v358
    %392 = vmatprep.subr.mxu0 %v361
    %393 = vmatpush1.msra.mxu0 %v360
    %394 = vmatprep.subr.mxu0 %v363
    %395 = vmatpush1.msra.mxu0 %v362
    %396 = vmatprep.subr.mxu0 0.0
    %397 = vmatpush1.msra.mxu0 0.0
    %398 = vmatprep.subr.mxu0 0.0
    %399 = vmatpush1.msra.mxu0 0.0
    %400 = vmatprep.subr.mxu0 0.0
    %401 = vmatpush1.msra.mxu0 0.0
    %402 = vmatprep.subr.mxu0 0.0
    %403 = vmatpush1.msra.mxu0 0.0
    %404 = vmatprep.subr.mxu0 0.0
    %405 = vmatpush1.msra.mxu0 0.0
    %406 = vmatprep.subr.mxu0 0.0
    %407 = vmatpush1.msra.mxu0 0.0
    %408 = vmatprep.subr.mxu0 0.0
    %409 = vmatpush1.msra.mxu0 0.0
    %410 = vmatprep.subr.mxu0 0.0
    %411 = vmatpush1.msra.mxu0 0.0
    %412 = vmatprep.subr.mxu0 0.0
    %413 = vmatpush1.msra.mxu0 0.0
    %414 = vmatprep.subr.mxu0 0.0
    %415 = vmatpush1.msra.mxu0 0.0
    %416 = vmatprep.subr.mxu0 0.0
    %417 = vmatpush1.msra.mxu0 0.0
    %418 = vmatprep.subr.mxu0 0.0
    %419 = vmatpush1.msra.mxu0 0.0
    %420 = vmatprep.subr.mxu0 0.0
    %421 = vmatpush1.msra.mxu0 0.0
    %422 = vmatprep.subr.mxu0 0.0
    %423 = vmatpush1.msra.mxu0 0.0
    %424 = vmatprep.subr.mxu0 0.0
    %425 = vmatpush1.msra.mxu0 0.0
    %426 = vmatprep.subr.mxu0 0.0
    %427 = vmatpush1.msra.mxu0 0.0
    %428 = vmatprep.mubr.f32.mxu0 0.0
    %429 = vmatmul.mubr.f32.gmra.mrb[0].mxu0 %v268
    %v430 = vpop.f32.mrb[0].mxu0
    %v431 = vadd.f32 0.0, %v430
    %v432 = vpop.f32.mrb[0].mxu0
    %v433 = vadd.f32 0.0, %v432
    %434 = vmatprep.mubr.f32.mxu0 0.0
    %435 = vmatmul.mubr.f32.gmra.mrb[0].mxu0 %v269
    %v436 = vpop.f32.mrb[0].mxu0
    %v437 = vadd.f32 0.0, %v436
    %v438 = vpop.f32.mrb[0].mxu0
    %v439 = vadd.f32 0.0, %v438
    %440 = vmatprep.mubr.f32.mxu0 0.0
    %441 = vmatmul.mubr.f32.gmra.mrb[0].mxu0 %v270
    %v442 = vpop.f32.mrb[0].mxu0
    %v443 = vadd.f32 0.0, %v442
    %v444 = vpop.f32.mrb[0].mxu0
    %v445 = vadd.f32 0.0, %v444
    %446 = vmatprep.mubr.f32.mxu0 0.0
    %447 = vmatmul.mubr.f32.gmra.mrb[0].mxu0 %v271
    %v448 = vpop.f32.mrb[0].mxu0
    %v449 = vadd.f32 0.0, %v448
    %v450 = vpop.f32.mrb[0].mxu0
    %v451 = vadd.f32 0.0, %v450
    %452 = vmatprep.mubr.f32.mxu0 0.0
    %453 = vmatmul.mubr.f32.gmra.mrb[0].mxu0 %v272
    %v454 = vpop.f32.mrb[0].mxu0
    %v455 = vadd.f32 0.0, %v454
    %v456 = vpop.f32.mrb[0].mxu0
    %v457 = vadd.f32 0.0, %v456
    %458 = vmatprep.mubr.f32.mxu0 0.0
    %459 = vmatmul.mubr.f32.gmra.mrb[0].mxu0 %v273
    %v460 = vpop.f32.mrb[0].mxu0
    %v461 = vadd.f32 0.0, %v460
    %v462 = vpop.f32.mrb[0].mxu0
    %v463 = vadd.f32 0.0, %v462
    %464 = vmatprep.mubr.f32.mxu0 0.0
    %465 = vmatmul.mubr.f32.gmra.mrb[0].mxu0 %v274
    %v466 = vpop.f32.mrb[0].mxu0
    %v467 = vadd.f32 0.0, %v466
    %v468 = vpop.f32.mrb[0].mxu0
    %v469 = vadd.f32 0.0, %v468
    %470 = vmatprep.mubr.f32.mxu0 0.0
    %471 = vmatmul.mubr.f32.gmra.mrb[0].mxu0 %v275
    %v472 = vpop.f32.mrb[0].mxu0
    %v473 = vadd.f32 0.0, %v472
    %v474 = vpop.f32.mrb[0].mxu0
    %v475 = vadd.f32 0.0, %v474
    %476 = vmatprep.mubr.f32.mxu0 0.0
    %477 = vmatmul.mubr.f32.gmra.mrb[0].mxu0 %v276
    %v478 = vpop.f32.mrb[0].mxu0
    %v479 = vadd.f32 0.0, %v478
    %v480 = vpop.f32.mrb[0].mxu0
    %v481 = vadd.f32 0.0, %v480
    %482 = vmatprep.mubr.f32.mxu0 0.0
    %483 = vmatmul.mubr.f32.gmra.mrb[0].mxu0 %v277
    %v484 = vpop.f32.mrb[0].mxu0
    %v485 = vadd.f32 0.0, %v484
    %v486 = vpop.f32.mrb[0].mxu0
    %v487 = vadd.f32 0.0, %v486
    %488 = vmatprep.mubr.f32.mxu0 0.0
    %489 = vmatmul.mubr.f32.gmra.mrb[0].mxu0 %v278
    %v490 = vpop.f32.mrb[0].mxu0
    %v491 = vadd.f32 0.0, %v490
    %v492 = vpop.f32.mrb[0].mxu0
    %v493 = vadd.f32 0.0, %v492
    %494 = vmatprep.mubr.f32.mxu0 0.0
    %495 = vmatmul.mubr.f32.gmra.mrb[0].mxu0 %v279
    %v496 = vpop.f32.mrb[0].mxu0
    %v497 = vadd.f32 0.0, %v496
    %v498 = vpop.f32.mrb[0].mxu0
    %v499 = vadd.f32 0.0, %v498
    %500 = vmatprep.mubr.f32.mxu0 0.0
    %501 = vmatmul.mubr.f32.gmra.mrb[0].mxu0 %v280
    %v502 = vpop.f32.mrb[0].mxu0
    %v503 = vadd.f32 0.0, %v502
    %v504 = vpop.f32.mrb[0].mxu0
    %v505 = vadd.f32 0.0, %v504
    %506 = vmatprep.mubr.f32.mxu0 0.0
    %507 = vmatmul.mubr.f32.gmra.mrb[0].mxu0 %v281
    %v508 = vpop.f32.mrb[0].mxu0
    %v509 = vadd.f32 0.0, %v508
    %v510 = vpop.f32.mrb[0].mxu0
    %v511 = vadd.f32 0.0, %v510
    %512 = vmatprep.mubr.f32.mxu0 0.0
    %513 = vmatmul.mubr.f32.gmra.mrb[0].mxu0 %v282
    %v514 = vpop.f32.mrb[0].mxu0
    %v515 = vadd.f32 0.0, %v514
    %v516 = vpop.f32.mrb[0].mxu0
    %v517 = vadd.f32 0.0, %v516
    %518 = vmatprep.mubr.f32.mxu0 0.0
    %519 = vmatmul.mubr.f32.gmra.mrb[0].mxu0 %v283
    %v520 = vpop.f32.mrb[0].mxu0
    %v521 = vadd.f32 0.0, %v520
    %v522 = vpop.f32.mrb[0].mxu0
    %v523 = vadd.f32 0.0, %v522
    %524 = vmatprep.mubr.f32.mxu0 0.0
    %525 = vmatmul.mubr.f32.gmra.mrb[0].mxu0 %v284
    %v526 = vpop.f32.mrb[0].mxu0
    %v527 = vadd.f32 0.0, %v526
    %v528 = vpop.f32.mrb[0].mxu0
    %v529 = vadd.f32 0.0, %v528
    %530 = vmatprep.mubr.f32.mxu0 0.0
    %531 = vmatmul.mubr.f32.gmra.mrb[0].mxu0 %v285
    %v532 = vpop.f32.mrb[0].mxu0
    %v533 = vadd.f32 0.0, %v532
    %v534 = vpop.f32.mrb[0].mxu0
    %v535 = vadd.f32 0.0, %v534
    %536 = vmatprep.mubr.f32.mxu0 0.0
    %537 = vmatmul.mubr.f32.gmra.mrb[0].mxu0 %v286
    %v538 = vpop.f32.mrb[0].mxu0
    %v539 = vadd.f32 0.0, %v538
    %v540 = vpop.f32.mrb[0].mxu0
    %v541 = vadd.f32 0.0, %v540
    %542 = vmatprep.mubr.f32.mxu0 0.0
    %543 = vmatmul.mubr.f32.gmra.mrb[0].mxu0 %v287
    %v544 = vpop.f32.mrb[0].mxu0
    %v545 = vadd.f32 0.0, %v544
    %v546 = vpop.f32.mrb[0].mxu0
    %v547 = vadd.f32 0.0, %v546
    %548 = vmatprep.mubr.f32.mxu0 0.0
    %549 = vmatmul.mubr.f32.gmra.mrb[0].mxu0 %v288
    %v550 = vpop.f32.mrb[0].mxu0
    %v551 = vadd.f32 0.0, %v550
    %v552 = vpop.f32.mrb[0].mxu0
    %v553 = vadd.f32 0.0, %v552
    %554 = vmatprep.mubr.f32.mxu0 0.0
    %555 = vmatmul.mubr.f32.gmra.mrb[0].mxu0 %v289
    %v556 = vpop.f32.mrb[0].mxu0
    %v557 = vadd.f32 0.0, %v556
    %v558 = vpop.f32.mrb[0].mxu0
    %v559 = vadd.f32 0.0, %v558
    %560 = vmatprep.mubr.f32.mxu0 0.0
    %561 = vmatmul.mubr.f32.gmra.mrb[0].mxu0 %v290
    %v562 = vpop.f32.mrb[0].mxu0
    %v563 = vadd.f32 0.0, %v562
    %v564 = vpop.f32.mrb[0].mxu0
    %v565 = vadd.f32 0.0, %v564
    %566 = vmatprep.mubr.f32.mxu0 0.0
    %567 = vmatmul.mubr.f32.gmra.mrb[0].mxu0 %v291
    %v568 = vpop.f32.mrb[0].mxu0
    %v569 = vadd.f32 0.0, %v568
    %v570 = vpop.f32.mrb[0].mxu0
    %v571 = vadd.f32 0.0, %v570
    %572 = vmatprep.mubr.f32.mxu0 0.0
    %573 = vmatmul.mubr.f32.gmra.mrb[0].mxu0 %v292
    %v574 = vpop.f32.mrb[0].mxu0
    %v575 = vadd.f32 0.0, %v574
    %v576 = vpop.f32.mrb[0].mxu0
    %v577 = vadd.f32 0.0, %v576
    %578 = vmatprep.mubr.f32.mxu0 0.0
    %579 = vmatmul.mubr.f32.gmra.mrb[0].mxu0 %v293
    %v580 = vpop.f32.mrb[0].mxu0
    %v581 = vadd.f32 0.0, %v580
    %v582 = vpop.f32.mrb[0].mxu0
    %v583 = vadd.f32 0.0, %v582
    %584 = vmatprep.mubr.f32.mxu0 0.0
    %585 = vmatmul.mubr.f32.gmra.mrb[0].mxu0 %v294
    %v586 = vpop.f32.mrb[0].mxu0
    %v587 = vadd.f32 0.0, %v586
    %v588 = vpop.f32.mrb[0].mxu0
    %v589 = vadd.f32 0.0, %v588
    %590 = vmatprep.mubr.f32.mxu0 0.0
    %591 = vmatmul.mubr.f32.gmra.mrb[0].mxu0 %v295
    %v592 = vpop.f32.mrb[0].mxu0
    %v593 = vadd.f32 0.0, %v592
    %v594 = vpop.f32.mrb[0].mxu0
    %v595 = vadd.f32 0.0, %v594
    %596 = vmatprep.mubr.f32.mxu0 0.0
    %597 = vmatmul.mubr.f32.gmra.mrb[0].mxu0 %v296
    %v598 = vpop.f32.mrb[0].mxu0
    %v599 = vadd.f32 0.0, %v598
    %v600 = vpop.f32.mrb[0].mxu0
    %v601 = vadd.f32 0.0, %v600
    %602 = vmatprep.mubr.f32.mxu0 0.0
    %603 = vmatmul.mubr.f32.gmra.mrb[0].mxu0 %v297
    %v604 = vpop.f32.mrb[0].mxu0
    %v605 = vadd.f32 0.0, %v604
    %v606 = vpop.f32.mrb[0].mxu0
    %v607 = vadd.f32 0.0, %v606
    %608 = vmatprep.mubr.f32.mxu0 0.0
    %609 = vmatmul.mubr.f32.gmra.mrb[0].mxu0 %v298
    %v610 = vpop.f32.mrb[0].mxu0
    %v611 = vadd.f32 0.0, %v610
    %v612 = vpop.f32.mrb[0].mxu0
    %v613 = vadd.f32 0.0, %v612
    %614 = vmatprep.mubr.f32.mxu0 0.0
    %615 = vmatmul.mubr.f32.gmra.mrb[0].mxu0 %v299
    %v616 = vpop.f32.mrb[0].mxu0
    %v617 = vadd.f32 0.0, %v616
    %v618 = vpop.f32.mrb[0].mxu0
    %v619 = vadd.f32 0.0, %v618
    %620 = vmatprep.mubr.f32.mxu0 0.0
    %621 = vmatmul.mubr.f32.gmra.mrb[0].mxu0 %v300
    %v622 = vpop.f32.mrb[0].mxu0
    %v623 = vadd.f32 0.0, %v622
    %v624 = vpop.f32.mrb[0].mxu0
    %v625 = vadd.f32 0.0, %v624
    %626 = vmatprep.mubr.f32.mxu0 0.0
    %627 = vmatmul.mubr.f32.gmra.mrb[0].mxu0 %v301
    %v628 = vpop.f32.mrb[0].mxu0
    %v629 = vadd.f32 0.0, %v628
    %v630 = vpop.f32.mrb[0].mxu0
    %v631 = vadd.f32 0.0, %v630
    %632 = vmatprep.mubr.f32.mxu0 0.0
    %633 = vmatmul.mubr.f32.gmra.mrb[0].mxu0 %v302
    %v634 = vpop.f32.mrb[0].mxu0
    %v635 = vadd.f32 0.0, %v634
    %v636 = vpop.f32.mrb[0].mxu0
    %v637 = vadd.f32 0.0, %v636
    %638 = vmatprep.mubr.f32.mxu0 0.0
    %639 = vmatmul.mubr.f32.gmra.mrb[0].mxu0 %v303
    %v640 = vpop.f32.mrb[0].mxu0
    %v641 = vadd.f32 0.0, %v640
    %v642 = vpop.f32.mrb[0].mxu0
    %v643 = vadd.f32 0.0, %v642
    %644 = vmatprep.mubr.f32.mxu0 0.0
    %645 = vmatmul.mubr.f32.gmra.mrb[0].mxu0 %v304
    %v646 = vpop.f32.mrb[0].mxu0
    %v647 = vadd.f32 0.0, %v646
    %v648 = vpop.f32.mrb[0].mxu0
    %v649 = vadd.f32 0.0, %v648
    %650 = vmatprep.mubr.f32.mxu0 0.0
    %651 = vmatmul.mubr.f32.gmra.mrb[0].mxu0 %v305
    %v652 = vpop.f32.mrb[0].mxu0
    %v653 = vadd.f32 0.0, %v652
    %v654 = vpop.f32.mrb[0].mxu0
    %v655 = vadd.f32 0.0, %v654
    %656 = vmatprep.mubr.f32.mxu0 0.0
    %657 = vmatmul.mubr.f32.gmra.mrb[0].mxu0 %v306
    %v658 = vpop.f32.mrb[0].mxu0
    %v659 = vadd.f32 0.0, %v658
    %v660 = vpop.f32.mrb[0].mxu0
    %v661 = vadd.f32 0.0, %v660
    %662 = vmatprep.mubr.f32.mxu0 0.0
    %663 = vmatmul.mubr.f32.gmra.mrb[0].mxu0 %v307
    %v664 = vpop.f32.mrb[0].mxu0
    %v665 = vadd.f32 0.0, %v664
    %v666 = vpop.f32.mrb[0].mxu0
    %v667 = vadd.f32 0.0, %v666
    %668 = vmatprep.mubr.f32.mxu0 0.0
    %669 = vmatmul.mubr.f32.gmra.mrb[0].mxu0 %v308
    %v670 = vpop.f32.mrb[0].mxu0
    %v671 = vadd.f32 0.0, %v670
    %v672 = vpop.f32.mrb[0].mxu0
    %v673 = vadd.f32 0.0, %v672
    %674 = vmatprep.mubr.f32.mxu0 0.0
    %675 = vmatmul.mubr.f32.gmra.mrb[0].mxu0 %v309
    %v676 = vpop.f32.mrb[0].mxu0
    %v677 = vadd.f32 0.0, %v676
    %v678 = vpop.f32.mrb[0].mxu0
    %v679 = vadd.f32 0.0, %v678
    %680 = vmatprep.mubr.f32.mxu0 0.0
    %681 = vmatmul.mubr.f32.gmra.mrb[0].mxu0 %v310
    %v682 = vpop.f32.mrb[0].mxu0
    %v683 = vadd.f32 0.0, %v682
    %v684 = vpop.f32.mrb[0].mxu0
    %v685 = vadd.f32 0.0, %v684
    %686 = vmatprep.mubr.f32.mxu0 0.0
    %687 = vmatmul.mubr.f32.gmra.mrb[0].mxu0 %v311
    %v688 = vpop.f32.mrb[0].mxu0
    %v689 = vadd.f32 0.0, %v688
    %v690 = vpop.f32.mrb[0].mxu0
    %v691 = vadd.f32 0.0, %v690
    %692 = vmatprep.mubr.f32.mxu0 0.0
    %693 = vmatmul.mubr.f32.gmra.mrb[0].mxu0 %v312
    %v694 = vpop.f32.mrb[0].mxu0
    %v695 = vadd.f32 0.0, %v694
    %v696 = vpop.f32.mrb[0].mxu0
    %v697 = vadd.f32 0.0, %v696
    %698 = vmatprep.mubr.f32.mxu0 0.0
    %699 = vmatmul.mubr.f32.gmra.mrb[0].mxu0 %v313
    %v700 = vpop.f32.mrb[0].mxu0
    %v701 = vadd.f32 0.0, %v700
    %v702 = vpop.f32.mrb[0].mxu0
    %v703 = vadd.f32 0.0, %v702
    %704 = vmatprep.mubr.f32.mxu0 0.0
    %705 = vmatmul.mubr.f32.gmra.mrb[0].mxu0 %v314
    %v706 = vpop.f32.mrb[0].mxu0
    %v707 = vadd.f32 0.0, %v706
    %v708 = vpop.f32.mrb[0].mxu0
    %v709 = vadd.f32 0.0, %v708
    %710 = vmatprep.mubr.f32.mxu0 0.0
    %711 = vmatmul.mubr.f32.gmra.mrb[0].mxu0 %v315
    %v712 = vpop.f32.mrb[0].mxu0
    %v713 = vadd.f32 0.0, %v712
    %v714 = vpop.f32.mrb[0].mxu0
    %v715 = vadd.f32 0.0, %v714
    %716 = vmatprep.mubr.f32.mxu0 0.0
    %717 = vmatmul.mubr.f32.gmra.mrb[0].mxu0 %v316
    %v718 = vpop.f32.mrb[0].mxu0
    %v719 = vadd.f32 0.0, %v718
    %v720 = vpop.f32.mrb[0].mxu0
    %v721 = vadd.f32 0.0, %v720
    %722 = vmatprep.mubr.f32.mxu0 0.0
    %723 = vmatmul.mubr.f32.gmra.mrb[0].mxu0 %v317
    %v724 = vpop.f32.mrb[0].mxu0
    %v725 = vadd.f32 0.0, %v724
    %v726 = vpop.f32.mrb[0].mxu0
    %v727 = vadd.f32 0.0, %v726
    %728 = vmatprep.mubr.f32.mxu0 0.0
    %729 = vmatmul.mubr.f32.gmra.mrb[0].mxu0 %v318
    %v730 = vpop.f32.mrb[0].mxu0
    %v731 = vadd.f32 0.0, %v730
    %v732 = vpop.f32.mrb[0].mxu0
    %v733 = vadd.f32 0.0, %v732
    %734 = vmatprep.mubr.f32.mxu0 0.0
    %735 = vmatmul.mubr.f32.gmra.mrb[0].mxu0 %v319
    %v736 = vpop.f32.mrb[0].mxu0
    %v737 = vadd.f32 0.0, %v736
    %v738 = vpop.f32.mrb[0].mxu0
    %v739 = vadd.f32 0.0, %v738
    %740 = vmatprep.mubr.f32.mxu0 0.0
    %741 = vmatmul.mubr.f32.gmra.mrb[0].mxu0 %v320
    %v742 = vpop.f32.mrb[0].mxu0
    %v743 = vadd.f32 0.0, %v742
    %v744 = vpop.f32.mrb[0].mxu0
    %v745 = vadd.f32 0.0, %v744
    %746 = vmatprep.mubr.f32.mxu0 0.0
    %747 = vmatmul.mubr.f32.gmra.mrb[0].mxu0 %v321
    %v748 = vpop.f32.mrb[0].mxu0
    %v749 = vadd.f32 0.0, %v748
    %v750 = vpop.f32.mrb[0].mxu0
    %v751 = vadd.f32 0.0, %v750
    %752 = vmatprep.mubr.f32.mxu0 0.0
    %753 = vmatmul.mubr.f32.gmra.mrb[0].mxu0 %v322
    %v754 = vpop.f32.mrb[0].mxu0
    %v755 = vadd.f32 0.0, %v754
    %v756 = vpop.f32.mrb[0].mxu0
    %v757 = vadd.f32 0.0, %v756
    %758 = vmatprep.mubr.f32.mxu0 0.0
    %759 = vmatmul.mubr.f32.gmra.mrb[0].mxu0 %v323
    %v760 = vpop.f32.mrb[0].mxu0
    %v761 = vadd.f32 0.0, %v760
    %v762 = vpop.f32.mrb[0].mxu0
    %v763 = vadd.f32 0.0, %v762
    %764 = vmatprep.mubr.f32.mxu0 0.0
    %765 = vmatmul.mubr.f32.gmra.mrb[0].mxu0 %v324
    %v766 = vpop.f32.mrb[0].mxu0
    %v767 = vadd.f32 0.0, %v766
    %v768 = vpop.f32.mrb[0].mxu0
    %v769 = vadd.f32 0.0, %v768
    %770 = vmatprep.mubr.f32.mxu0 0.0
    %771 = vmatmul.mubr.f32.gmra.mrb[0].mxu0 %v325
    %v772 = vpop.f32.mrb[0].mxu0
    %v773 = vadd.f32 0.0, %v772
    %v774 = vpop.f32.mrb[0].mxu0
    %v775 = vadd.f32 0.0, %v774
    %776 = vmatprep.mubr.f32.mxu0 0.0
    %777 = vmatmul.mubr.f32.gmra.mrb[0].mxu0 %v326
    %v778 = vpop.f32.mrb[0].mxu0
    %v779 = vadd.f32 0.0, %v778
    %v780 = vpop.f32.mrb[0].mxu0
    %v781 = vadd.f32 0.0, %v780
    %782 = vmatprep.mubr.f32.mxu0 0.0
    %783 = vmatmul.mubr.f32.gmra.mrb[0].mxu0 %v327
    %v784 = vpop.f32.mrb[0].mxu0
    %v785 = vadd.f32 0.0, %v784
    %v786 = vpop.f32.mrb[0].mxu0
    %v787 = vadd.f32 0.0, %v786
    %788 = vmatprep.mubr.f32.mxu0 0.0
    %789 = vmatmul.mubr.f32.gmra.mrb[0].mxu0 %v328
    %v790 = vpop.f32.mrb[0].mxu0
    %v791 = vadd.f32 0.0, %v790
    %v792 = vpop.f32.mrb[0].mxu0
    %v793 = vadd.f32 0.0, %v792
    %794 = vmatprep.mubr.f32.mxu0 0.0
    %795 = vmatmul.mubr.f32.gmra.mrb[0].mxu0 %v329
    %v796 = vpop.f32.mrb[0].mxu0
    %v797 = vadd.f32 0.0, %v796
    %v798 = vpop.f32.mrb[0].mxu0
    %v799 = vadd.f32 0.0, %v798
    %800 = vmatprep.mubr.f32.mxu0 0.0
    %801 = vmatmul.mubr.f32.gmra.mrb[0].mxu0 %v330
    %v802 = vpop.f32.mrb[0].mxu0
    %v803 = vadd.f32 0.0, %v802
    %v804 = vpop.f32.mrb[0].mxu0
    %v805 = vadd.f32 0.0, %v804
    %806 = vmatprep.mubr.f32.mxu0 0.0
    %807 = vmatmul.mubr.f32.gmra.mrb[0].mxu0 %v331
    %v808 = vpop.f32.mrb[0].mxu0
    %v809 = vadd.f32 0.0, %v808
    %v810 = vpop.f32.mrb[0].mxu0
    %v811 = vadd.f32 0.0, %v810
    %812 = vdwg.mxu0
    %813 = vmatprep.subr.mxu0 %v205
    %814 = vmatpush1.msra.mxu0 %v204
    %815 = vmatprep.subr.mxu0 %v207
    %816 = vmatpush1.msra.mxu0 %v206
    %817 = vmatprep.subr.mxu0 %v209
    %818 = vmatpush1.msra.mxu0 %v208
    %819 = vmatprep.subr.mxu0 %v211
    %820 = vmatpush1.msra.mxu0 %v210
    %821 = vmatprep.subr.mxu0 %v213
    %822 = vmatpush1.msra.mxu0 %v212
    %823 = vmatprep.subr.mxu0 %v215
    %824 = vmatpush1.msra.mxu0 %v214
    %825 = vmatprep.subr.mxu0 %v217
    %826 = vmatpush1.msra.mxu0 %v216
    %827 = vmatprep.subr.mxu0 %v219
    %828 = vmatpush1.msra.mxu0 %v218
    %829 = vmatprep.subr.mxu0 %v221
    %830 = vmatpush1.msra.mxu0 %v220
    %831 = vmatprep.subr.mxu0 %v223
    %832 = vmatpush1.msra.mxu0 %v222
    %833 = vmatprep.subr.mxu0 %v225
    %834 = vmatpush1.msra.mxu0 %v224
    %835 = vmatprep.subr.mxu0 %v227
    %836 = vmatpush1.msra.mxu0 %v226
    %837 = vmatprep.subr.mxu0 %v229
    %838 = vmatpush1.msra.mxu0 %v228
    %839 = vmatprep.subr.mxu0 %v231
    %840 = vmatpush1.msra.mxu0 %v230
    %841 = vmatprep.subr.mxu0 %v233
    %842 = vmatpush1.msra.mxu0 %v232
    %843 = vmatprep.subr.mxu0 %v235
    %844 = vmatpush1.msra.mxu0 %v234
    %845 = vmatprep.subr.mxu0 %v237
    %846 = vmatpush1.msra.mxu0 %v236
    %847 = vmatprep.subr.mxu0 %v239
    %848 = vmatpush1.msra.mxu0 %v238
    %849 = vmatprep.subr.mxu0 %v241
    %850 = vmatpush1.msra.mxu0 %v240
    %851 = vmatprep.subr.mxu0 %v243
    %852 = vmatpush1.msra.mxu0 %v242
    %853 = vmatprep.subr.mxu0 %v245
    %854 = vmatpush1.msra.mxu0 %v244
    %855 = vmatprep.subr.mxu0 %v247
    %856 = vmatpush1.msra.mxu0 %v246
    %857 = vmatprep.subr.mxu0 %v249
    %858 = vmatpush1.msra.mxu0 %v248
    %859 = vmatprep.subr.mxu0 %v251
    %860 = vmatpush1.msra.mxu0 %v250
    %861 = vmatprep.subr.mxu0 %v253
    %862 = vmatpush1.msra.mxu0 %v252
    %863 = vmatprep.subr.mxu0 %v255
    %864 = vmatpush1.msra.mxu0 %v254
    %865 = vmatprep.subr.mxu0 %v257
    %866 = vmatpush1.msra.mxu0 %v256
    %867 = vmatprep.subr.mxu0 %v259
    %868 = vmatpush1.msra.mxu0 %v258
    %869 = vmatprep.subr.mxu0 %v261
    %870 = vmatpush1.msra.mxu0 %v260
    %871 = vmatprep.subr.mxu0 %v263
    %872 = vmatpush1.msra.mxu0 %v262
    %873 = vmatprep.subr.mxu0 %v265
    %874 = vmatpush1.msra.mxu0 %v264
    %875 = vmatprep.subr.mxu0 %v267
    %876 = vmatpush1.msra.mxu0 %v266
    %877 = vmatprep.mubr.f32.mxu0 %v140
    %878 = vmatmul.mubr.f32.gmra.mrb[0].mxu0 %v76
    %v879 = vpop.f32.mrb[0].mxu0
    %v880 = vadd.f32 %v431, %v879
    %v881 = vpop.f32.mrb[0].mxu0
    %v882 = vadd.f32 %v433, %v881
    %883 = vmatprep.mubr.f32.mxu0 %v141
    %884 = vmatmul.mubr.f32.gmra.mrb[0].mxu0 %v77
    %v885 = vpop.f32.mrb[0].mxu0
    %v886 = vadd.f32 %v437, %v885
    %v887 = vpop.f32.mrb[0].mxu0
    %v888 = vadd.f32 %v439, %v887
    %889 = vmatprep.mubr.f32.mxu0 %v142
    %890 = vmatmul.mubr.f32.gmra.mrb[0].mxu0 %v78
    %v891 = vpop.f32.mrb[0].mxu0
    %v892 = vadd.f32 %v443, %v891
    %v893 = vpop.f32.mrb[0].mxu0
    %v894 = vadd.f32 %v445, %v893
    %895 = vmatprep.mubr.f32.mxu0 %v143
    %896 = vmatmul.mubr.f32.gmra.mrb[0].mxu0 %v79
    %v897 = vpop.f32.mrb[0].mxu0
    %v898 = vadd.f32 %v449, %v897
    %v899 = vpop.f32.mrb[0].mxu0
    %v900 = vadd.f32 %v451, %v899
    %901 = vmatprep.mubr.f32.mxu0 %v144
    %902 = vmatmul.mubr.f32.gmra.mrb[0].mxu0 %v80
    %v903 = vpop.f32.mrb[0].mxu0
    %v904 = vadd.f32 %v455, %v903
    %v905 = vpop.f32.mrb[0].mxu0
    %v906 = vadd.f32 %v457, %v905
    %907 = vmatprep.mubr.f32.mxu0 %v145
    %908 = vmatmul.mubr.f32.gmra.mrb[0].mxu0 %v81
    %v909 = vpop.f32.mrb[0].mxu0
    %v910 = vadd.f32 %v461, %v909
    %v911 = vpop.f32.mrb[0].mxu0
    %v912 = vadd.f32 %v463, %v911
    %913 = vmatprep.mubr.f32.mxu0 %v146
    %914 = vmatmul.mubr.f32.gmra.mrb[0].mxu0 %v82
    %v915 = vpop.f32.mrb[0].mxu0
    %v916 = vadd.f32 %v467, %v915
    %v917 = vpop.f32.mrb[0].mxu0
    %v918 = vadd.f32 %v469, %v917
    %919 = vmatprep.mubr.f32.mxu0 %v147
    %920 = vmatmul.mubr.f32.gmra.mrb[0].mxu0 %v83
    %v921 = vpop.f32.mrb[0].mxu0
    %v922 = vadd.f32 %v473, %v921
    %v923 = vpop.f32.mrb[0].mxu0
    %v924 = vadd.f32 %v475, %v923
    %925 = vmatprep.mubr.f32.mxu0 %v148
    %926 = vmatmul.mubr.f32.gmra.mrb[0].mxu0 %v84
    %v927 = vpop.f32.mrb[0].mxu0
    %v928 = vadd.f32 %v479, %v927
    %v929 = vpop.f32.mrb[0].mxu0
    %v930 = vadd.f32 %v481, %v929
    %931 = vmatprep.mubr.f32.mxu0 %v149
    %932 = vmatmul.mubr.f32.gmra.mrb[0].mxu0 %v85
    %v933 = vpop.f32.mrb[0].mxu0
    %v934 = vadd.f32 %v485, %v933
    %v935 = vpop.f32.mrb[0].mxu0
    %v936 = vadd.f32 %v487, %v935
    %937 = vmatprep.mubr.f32.mxu0 %v150
    %938 = vmatmul.mubr.f32.gmra.mrb[0].mxu0 %v86
    %v939 = vpop.f32.mrb[0].mxu0
    %v940 = vadd.f32 %v491, %v939
    %v941 = vpop.f32.mrb[0].mxu0
    %v942 = vadd.f32 %v493, %v941
    %943 = vmatprep.mubr.f32.mxu0 %v151
    %944 = vmatmul.mubr.f32.gmra.mrb[0].mxu0 %v87
    %v945 = vpop.f32.mrb[0].mxu0
    %v946 = vadd.f32 %v497, %v945
    %v947 = vpop.f32.mrb[0].mxu0
    %v948 = vadd.f32 %v499, %v947
    %949 = vmatprep.mubr.f32.mxu0 %v152
    %950 = vmatmul.mubr.f32.gmra.mrb[0].mxu0 %v88
    %v951 = vpop.f32.mrb[0].mxu0
    %v952 = vadd.f32 %v503, %v951
    %v953 = vpop.f32.mrb[0].mxu0
    %v954 = vadd.f32 %v505, %v953
    %955 = vmatprep.mubr.f32.mxu0 %v153
    %956 = vmatmul.mubr.f32.gmra.mrb[0].mxu0 %v89
    %v957 = vpop.f32.mrb[0].mxu0
    %v958 = vadd.f32 %v509, %v957
    %v959 = vpop.f32.mrb[0].mxu0
    %v960 = vadd.f32 %v511, %v959
    %961 = vmatprep.mubr.f32.mxu0 %v154
    %962 = vmatmul.mubr.f32.gmra.mrb[0].mxu0 %v90
    %v963 = vpop.f32.mrb[0].mxu0
    %v964 = vadd.f32 %v515, %v963
    %v965 = vpop.f32.mrb[0].mxu0
    %v966 = vadd.f32 %v517, %v965
    %967 = vmatprep.mubr.f32.mxu0 %v155
    %968 = vmatmul.mubr.f32.gmra.mrb[0].mxu0 %v91
    %v969 = vpop.f32.mrb[0].mxu0
    %v970 = vadd.f32 %v521, %v969
    %v971 = vpop.f32.mrb[0].mxu0
    %v972 = vadd.f32 %v523, %v971
    %973 = vmatprep.mubr.f32.mxu0 %v156
    %974 = vmatmul.mubr.f32.gmra.mrb[0].mxu0 %v92
    %v975 = vpop.f32.mrb[0].mxu0
    %v976 = vadd.f32 %v527, %v975
    %v977 = vpop.f32.mrb[0].mxu0
    %v978 = vadd.f32 %v529, %v977
    %979 = vmatprep.mubr.f32.mxu0 %v157
    %980 = vmatmul.mubr.f32.gmra.mrb[0].mxu0 %v93
    %v981 = vpop.f32.mrb[0].mxu0
    %v982 = vadd.f32 %v533, %v981
    %v983 = vpop.f32.mrb[0].mxu0
    %v984 = vadd.f32 %v535, %v983
    %985 = vmatprep.mubr.f32.mxu0 %v158
    %986 = vmatmul.mubr.f32.gmra.mrb[0].mxu0 %v94
    %v987 = vpop.f32.mrb[0].mxu0
    %v988 = vadd.f32 %v539, %v987
    %v989 = vpop.f32.mrb[0].mxu0
    %v990 = vadd.f32 %v541, %v989
    %991 = vmatprep.mubr.f32.mxu0 %v159
    %992 = vmatmul.mubr.f32.gmra.mrb[0].mxu0 %v95
    %v993 = vpop.f32.mrb[0].mxu0
    %v994 = vadd.f32 %v545, %v993
    %v995 = vpop.f32.mrb[0].mxu0
    %v996 = vadd.f32 %v547, %v995
    %997 = vmatprep.mubr.f32.mxu0 %v160
    %998 = vmatmul.mubr.f32.gmra.mrb[0].mxu0 %v96
    %v999 = vpop.f32.mrb[0].mxu0
    %v1000 = vadd.f32 %v551, %v999
    %v1001 = vpop.f32.mrb[0].mxu0
    %v1002 = vadd.f32 %v553, %v1001
    %1003 = vmatprep.mubr.f32.mxu0 %v161
    %1004 = vmatmul.mubr.f32.gmra.mrb[0].mxu0 %v97
    %v1005 = vpop.f32.mrb[0].mxu0
    %v1006 = vadd.f32 %v557, %v1005
    %v1007 = vpop.f32.mrb[0].mxu0
    %v1008 = vadd.f32 %v559, %v1007
    %1009 = vmatprep.mubr.f32.mxu0 %v162
    %1010 = vmatmul.mubr.f32.gmra.mrb[0].mxu0 %v98
    %v1011 = vpop.f32.mrb[0].mxu0
    %v1012 = vadd.f32 %v563, %v1011
    %v1013 = vpop.f32.mrb[0].mxu0
    %v1014 = vadd.f32 %v565, %v1013
    %1015 = vmatprep.mubr.f32.mxu0 %v163
    %1016 = vmatmul.mubr.f32.gmra.mrb[0].mxu0 %v99
    %v1017 = vpop.f32.mrb[0].mxu0
    %v1018 = vadd.f32 %v569, %v1017
    %v1019 = vpop.f32.mrb[0].mxu0
    %v1020 = vadd.f32 %v571, %v1019
    %1021 = vmatprep.mubr.f32.mxu0 %v164
    %1022 = vmatmul.mubr.f32.gmra.mrb[0].mxu0 %v100
    %v1023 = vpop.f32.mrb[0].mxu0
    %v1024 = vadd.f32 %v575, %v1023
    %v1025 = vpop.f32.mrb[0].mxu0
    %v1026 = vadd.f32 %v577, %v1025
    %1027 = vmatprep.mubr.f32.mxu0 %v165
    %1028 = vmatmul.mubr.f32.gmra.mrb[0].mxu0 %v101
    %v1029 = vpop.f32.mrb[0].mxu0
    %v1030 = vadd.f32 %v581, %v1029
    %v1031 = vpop.f32.mrb[0].mxu0
    %v1032 = vadd.f32 %v583, %v1031
    %1033 = vmatprep.mubr.f32.mxu0 %v166
    %1034 = vmatmul.mubr.f32.gmra.mrb[0].mxu0 %v102
    %v1035 = vpop.f32.mrb[0].mxu0
    %v1036 = vadd.f32 %v587, %v1035
    %v1037 = vpop.f32.mrb[0].mxu0
    %v1038 = vadd.f32 %v589, %v1037
    %1039 = vmatprep.mubr.f32.mxu0 %v167
    %1040 = vmatmul.mubr.f32.gmra.mrb[0].mxu0 %v103
    %v1041 = vpop.f32.mrb[0].mxu0
    %v1042 = vadd.f32 %v593, %v1041
    %v1043 = vpop.f32.mrb[0].mxu0
    %v1044 = vadd.f32 %v595, %v1043
    %1045 = vmatprep.mubr.f32.mxu0 %v168
    %1046 = vmatmul.mubr.f32.gmra.mrb[0].mxu0 %v104
    %v1047 = vpop.f32.mrb[0].mxu0
    %v1048 = vadd.f32 %v599, %v1047
    %v1049 = vpop.f32.mrb[0].mxu0
    %v1050 = vadd.f32 %v601, %v1049
    %1051 = vmatprep.mubr.f32.mxu0 %v169
    %1052 = vmatmul.mubr.f32.gmra.mrb[0].mxu0 %v105
    %v1053 = vpop.f32.mrb[0].mxu0
    %v1054 = vadd.f32 %v605, %v1053
    %v1055 = vpop.f32.mrb[0].mxu0
    %v1056 = vadd.f32 %v607, %v1055
    %1057 = vmatprep.mubr.f32.mxu0 %v170
    %1058 = vmatmul.mubr.f32.gmra.mrb[0].mxu0 %v106
    %v1059 = vpop.f32.mrb[0].mxu0
    %v1060 = vadd.f32 %v611, %v1059
    %v1061 = vpop.f32.mrb[0].mxu0
    %v1062 = vadd.f32 %v613, %v1061
    %1063 = vmatprep.mubr.f32.mxu0 %v171
    %1064 = vmatmul.mubr.f32.gmra.mrb[0].mxu0 %v107
    %v1065 = vpop.f32.mrb[0].mxu0
    %v1066 = vadd.f32 %v617, %v1065
    %v1067 = vpop.f32.mrb[0].mxu0
    %v1068 = vadd.f32 %v619, %v1067
    %1069 = vmatprep.mubr.f32.mxu0 %v172
    %1070 = vmatmul.mubr.f32.gmra.mrb[0].mxu0 %v108
    %v1071 = vpop.f32.mrb[0].mxu0
    %v1072 = vadd.f32 %v623, %v1071
    %v1073 = vpop.f32.mrb[0].mxu0
    %v1074 = vadd.f32 %v625, %v1073
    %1075 = vmatprep.mubr.f32.mxu0 %v173
    %1076 = vmatmul.mubr.f32.gmra.mrb[0].mxu0 %v109
    %v1077 = vpop.f32.mrb[0].mxu0
    %v1078 = vadd.f32 %v629, %v1077
    %v1079 = vpop.f32.mrb[0].mxu0
    %v1080 = vadd.f32 %v631, %v1079
    %1081 = vmatprep.mubr.f32.mxu0 %v174
    %1082 = vmatmul.mubr.f32.gmra.mrb[0].mxu0 %v110
    %v1083 = vpop.f32.mrb[0].mxu0
    %v1084 = vadd.f32 %v635, %v1083
    %v1085 = vpop.f32.mrb[0].mxu0
    %v1086 = vadd.f32 %v637, %v1085
    %1087 = vmatprep.mubr.f32.mxu0 %v175
    %1088 = vmatmul.mubr.f32.gmra.mrb[0].mxu0 %v111
    %v1089 = vpop.f32.mrb[0].mxu0
    %v1090 = vadd.f32 %v641, %v1089
    %v1091 = vpop.f32.mrb[0].mxu0
    %v1092 = vadd.f32 %v643, %v1091
    %1093 = vmatprep.mubr.f32.mxu0 %v176
    %1094 = vmatmul.mubr.f32.gmra.mrb[0].mxu0 %v112
    %v1095 = vpop.f32.mrb[0].mxu0
    %v1096 = vadd.f32 %v647, %v1095
    %v1097 = vpop.f32.mrb[0].mxu0
    %v1098 = vadd.f32 %v649, %v1097
    %1099 = vmatprep.mubr.f32.mxu0 %v177
    %1100 = vmatmul.mubr.f32.gmra.mrb[0].mxu0 %v113
    %v1101 = vpop.f32.mrb[0].mxu0
    %v1102 = vadd.f32 %v653, %v1101
    %v1103 = vpop.f32.mrb[0].mxu0
    %v1104 = vadd.f32 %v655, %v1103
    %1105 = vmatprep.mubr.f32.mxu0 %v178
    %1106 = vmatmul.mubr.f32.gmra.mrb[0].mxu0 %v114
    %v1107 = vpop.f32.mrb[0].mxu0
    %v1108 = vadd.f32 %v659, %v1107
    %v1109 = vpop.f32.mrb[0].mxu0
    %v1110 = vadd.f32 %v661, %v1109
    %1111 = vmatprep.mubr.f32.mxu0 %v179
    %1112 = vmatmul.mubr.f32.gmra.mrb[0].mxu0 %v115
    %v1113 = vpop.f32.mrb[0].mxu0
    %v1114 = vadd.f32 %v665, %v1113
    %v1115 = vpop.f32.mrb[0].mxu0
    %v1116 = vadd.f32 %v667, %v1115
    %1117 = vmatprep.mubr.f32.mxu0 %v180
    %1118 = vmatmul.mubr.f32.gmra.mrb[0].mxu0 %v116
    %v1119 = vpop.f32.mrb[0].mxu0
    %v1120 = vadd.f32 %v671, %v1119
    %v1121 = vpop.f32.mrb[0].mxu0
    %v1122 = vadd.f32 %v673, %v1121
    %1123 = vmatprep.mubr.f32.mxu0 %v181
    %1124 = vmatmul.mubr.f32.gmra.mrb[0].mxu0 %v117
    %v1125 = vpop.f32.mrb[0].mxu0
    %v1126 = vadd.f32 %v677, %v1125
    %v1127 = vpop.f32.mrb[0].mxu0
    %v1128 = vadd.f32 %v679, %v1127
    %1129 = vmatprep.mubr.f32.mxu0 %v182
    %1130 = vmatmul.mubr.f32.gmra.mrb[0].mxu0 %v118
    %v1131 = vpop.f32.mrb[0].mxu0
    %v1132 = vadd.f32 %v683, %v1131
    %v1133 = vpop.f32.mrb[0].mxu0
    %v1134 = vadd.f32 %v685, %v1133
    %1135 = vmatprep.mubr.f32.mxu0 %v183
    %1136 = vmatmul.mubr.f32.gmra.mrb[0].mxu0 %v119
    %v1137 = vpop.f32.mrb[0].mxu0
    %v1138 = vadd.f32 %v689, %v1137
    %v1139 = vpop.f32.mrb[0].mxu0
    %v1140 = vadd.f32 %v691, %v1139
    %1141 = vmatprep.mubr.f32.mxu0 %v184
    %1142 = vmatmul.mubr.f32.gmra.mrb[0].mxu0 %v120
    %v1143 = vpop.f32.mrb[0].mxu0
    %v1144 = vadd.f32 %v695, %v1143
    %v1145 = vpop.f32.mrb[0].mxu0
    %v1146 = vadd.f32 %v697, %v1145
    %1147 = vmatprep.mubr.f32.mxu0 %v185
    %1148 = vmatmul.mubr.f32.gmra.mrb[0].mxu0 %v121
    %v1149 = vpop.f32.mrb[0].mxu0
    %v1150 = vadd.f32 %v701, %v1149
    %v1151 = vpop.f32.mrb[0].mxu0
    %v1152 = vadd.f32 %v703, %v1151
    %1153 = vmatprep.mubr.f32.mxu0 %v186
    %1154 = vmatmul.mubr.f32.gmra.mrb[0].mxu0 %v122
    %v1155 = vpop.f32.mrb[0].mxu0
    %v1156 = vadd.f32 %v707, %v1155
    %v1157 = vpop.f32.mrb[0].mxu0
    %v1158 = vadd.f32 %v709, %v1157
    %1159 = vmatprep.mubr.f32.mxu0 %v187
    %1160 = vmatmul.mubr.f32.gmra.mrb[0].mxu0 %v123
    %v1161 = vpop.f32.mrb[0].mxu0
    %v1162 = vadd.f32 %v713, %v1161
    %v1163 = vpop.f32.mrb[0].mxu0
    %v1164 = vadd.f32 %v715, %v1163
    %1165 = vmatprep.mubr.f32.mxu0 %v188
    %1166 = vmatmul.mubr.f32.gmra.mrb[0].mxu0 %v124
    %v1167 = vpop.f32.mrb[0].mxu0
    %v1168 = vadd.f32 %v719, %v1167
    %v1169 = vpop.f32.mrb[0].mxu0
    %v1170 = vadd.f32 %v721, %v1169
    %1171 = vmatprep.mubr.f32.mxu0 %v189
    %1172 = vmatmul.mubr.f32.gmra.mrb[0].mxu0 %v125
    %v1173 = vpop.f32.mrb[0].mxu0
    %v1174 = vadd.f32 %v725, %v1173
    %v1175 = vpop.f32.mrb[0].mxu0
    %v1176 = vadd.f32 %v727, %v1175
    %1177 = vmatprep.mubr.f32.mxu0 %v190
    %1178 = vmatmul.mubr.f32.gmra.mrb[0].mxu0 %v126
    %v1179 = vpop.f32.mrb[0].mxu0
    %v1180 = vadd.f32 %v731, %v1179
    %v1181 = vpop.f32.mrb[0].mxu0
    %v1182 = vadd.f32 %v733, %v1181
    %1183 = vmatprep.mubr.f32.mxu0 %v191
    %1184 = vmatmul.mubr.f32.gmra.mrb[0].mxu0 %v127
    %v1185 = vpop.f32.mrb[0].mxu0
    %v1186 = vadd.f32 %v737, %v1185
    %v1187 = vpop.f32.mrb[0].mxu0
    %v1188 = vadd.f32 %v739, %v1187
    %1189 = vmatprep.mubr.f32.mxu0 %v192
    %1190 = vmatmul.mubr.f32.gmra.mrb[0].mxu0 %v128
    %v1191 = vpop.f32.mrb[0].mxu0
    %v1192 = vadd.f32 %v743, %v1191
    %v1193 = vpop.f32.mrb[0].mxu0
    %v1194 = vadd.f32 %v745, %v1193
    %1195 = vmatprep.mubr.f32.mxu0 %v193
    %1196 = vmatmul.mubr.f32.gmra.mrb[0].mxu0 %v129
    %v1197 = vpop.f32.mrb[0].mxu0
    %v1198 = vadd.f32 %v749, %v1197
    %v1199 = vpop.f32.mrb[0].mxu0
    %v1200 = vadd.f32 %v751, %v1199
    %1201 = vmatprep.mubr.f32.mxu0 %v194
    %1202 = vmatmul.mubr.f32.gmra.mrb[0].mxu0 %v130
    %v1203 = vpop.f32.mrb[0].mxu0
    %v1204 = vadd.f32 %v755, %v1203
    %v1205 = vpop.f32.mrb[0].mxu0
    %v1206 = vadd.f32 %v757, %v1205
    %1207 = vmatprep.mubr.f32.mxu0 %v195
    %1208 = vmatmul.mubr.f32.gmra.mrb[0].mxu0 %v131
    %v1209 = vpop.f32.mrb[0].mxu0
    %v1210 = vadd.f32 %v761, %v1209
    %v1211 = vpop.f32.mrb[0].mxu0
    %v1212 = vadd.f32 %v763, %v1211
    %1213 = vmatprep.mubr.f32.mxu0 %v196
    %1214 = vmatmul.mubr.f32.gmra.mrb[0].mxu0 %v132
    %v1215 = vpop.f32.mrb[0].mxu0
    %v1216 = vadd.f32 %v767, %v1215
    %v1217 = vpop.f32.mrb[0].mxu0
    %v1218 = vadd.f32 %v769, %v1217
    %1219 = vmatprep.mubr.f32.mxu0 %v197
    %1220 = vmatmul.mubr.f32.gmra.mrb[0].mxu0 %v133
    %v1221 = vpop.f32.mrb[0].mxu0
    %v1222 = vadd.f32 %v773, %v1221
    %v1223 = vpop.f32.mrb[0].mxu0
    %v1224 = vadd.f32 %v775, %v1223
    %1225 = vmatprep.mubr.f32.mxu0 %v198
    %1226 = vmatmul.mubr.f32.gmra.mrb[0].mxu0 %v134
    %v1227 = vpop.f32.mrb[0].mxu0
    %v1228 = vadd.f32 %v779, %v1227
    %v1229 = vpop.f32.mrb[0].mxu0
    %v1230 = vadd.f32 %v781, %v1229
    %1231 = vmatprep.mubr.f32.mxu0 %v199
    %1232 = vmatmul.mubr.f32.gmra.mrb[0].mxu0 %v135
    %v1233 = vpop.f32.mrb[0].mxu0
    %v1234 = vadd.f32 %v785, %v1233
    %v1235 = vpop.f32.mrb[0].mxu0
    %v1236 = vadd.f32 %v787, %v1235
    %1237 = vmatprep.mubr.f32.mxu0 %v200
    %1238 = vmatmul.mubr.f32.gmra.mrb[0].mxu0 %v136
    %v1239 = vpop.f32.mrb[0].mxu0
    %v1240 = vadd.f32 %v791, %v1239
    %v1241 = vpop.f32.mrb[0].mxu0
    %v1242 = vadd.f32 %v793, %v1241
    %1243 = vmatprep.mubr.f32.mxu0 %v201
    %1244 = vmatmul.mubr.f32.gmra.mrb[0].mxu0 %v137
    %v1245 = vpop.f32.mrb[0].mxu0
    %v1246 = vadd.f32 %v797, %v1245
    %v1247 = vpop.f32.mrb[0].mxu0
    %v1248 = vadd.f32 %v799, %v1247
    %1249 = vmatprep.mubr.f32.mxu0 %v202
    %1250 = vmatmul.mubr.f32.gmra.mrb[0].mxu0 %v138
    %v1251 = vpop.f32.mrb[0].mxu0
    %v1252 = vadd.f32 %v803, %v1251
    %v1253 = vpop.f32.mrb[0].mxu0
    %v1254 = vadd.f32 %v805, %v1253
    %1255 = vmatprep.mubr.f32.mxu0 %v203
    %1256 = vmatmul.mubr.f32.gmra.mrb[0].mxu0 %v139
    %v1257 = vpop.f32.mrb[0].mxu0
    %v1258 = vadd.f32 %v809, %v1257
    %v1259 = vpop.f32.mrb[0].mxu0
    %v1260 = vadd.f32 %v811, %v1259
    %1261 = vdwg.mxu0
    %v1262 = vld [vmem:[%s4] sm:$0x3]
    %v1264 = vlaneseq
    %v1265 = vshrl.u32 %v1264, 7
    %v1266 = vsub.s32 0, %v1265
    %v1267 = vrot.slane %v1262, %v1266
    %v1268 = vlaneseq
    %v1269 = vshrl.u32 %v1268, 7
    %v1270 = vsub.s32 1, %v1269
    %v1271 = vrot.slane %v1262, %v1270
    %v1274 = vadd.f32 %v880, %v1267
    %v1275 = vadd.f32 %v882, %v1271
    %v1276 = vadd.f32 %v886, %v1267
    %v1277 = vadd.f32 %v888, %v1271
    %v1278 = vadd.f32 %v892, %v1267
    %v1279 = vadd.f32 %v894, %v1271
    %v1280 = vadd.f32 %v898, %v1267
    %v1281 = vadd.f32 %v900, %v1271
    %v1282 = vadd.f32 %v904, %v1267
    %v1283 = vadd.f32 %v906, %v1271
    %v1284 = vadd.f32 %v910, %v1267
    %v1285 = vadd.f32 %v912, %v1271
    %v1286 = vadd.f32 %v916, %v1267
    %v1287 = vadd.f32 %v918, %v1271
    %v1288 = vadd.f32 %v922, %v1267
    %v1289 = vadd.f32 %v924, %v1271
    %v1290 = vadd.f32 %v928, %v1267
    %v1291 = vadd.f32 %v930, %v1271
    %v1292 = vadd.f32 %v934, %v1267
    %v1293 = vadd.f32 %v936, %v1271
    %v1294 = vadd.f32 %v940, %v1267
    %v1295 = vadd.f32 %v942, %v1271
    %v1296 = vadd.f32 %v946, %v1267
    %v1297 = vadd.f32 %v948, %v1271
    %v1298 = vadd.f32 %v952, %v1267
    %v1299 = vadd.f32 %v954, %v1271
    %v1300 = vadd.f32 %v958, %v1267
    %v1301 = vadd.f32 %v960, %v1271
    %v1302 = vadd.f32 %v964, %v1267
    %v1303 = vadd.f32 %v966, %v1271
    %v1304 = vadd.f32 %v970, %v1267
    %v1305 = vadd.f32 %v972, %v1271
    %v1306 = vadd.f32 %v976, %v1267
    %v1307 = vadd.f32 %v978, %v1271
    %v1308 = vadd.f32 %v982, %v1267
    %v1309 = vadd.f32 %v984, %v1271
    %v1310 = vadd.f32 %v988, %v1267
    %v1311 = vadd.f32 %v990, %v1271
    %v1312 = vadd.f32 %v994, %v1267
    %v1313 = vadd.f32 %v996, %v1271
    %v1314 = vadd.f32 %v1000, %v1267
    %v1315 = vadd.f32 %v1002, %v1271
    %v1316 = vadd.f32 %v1006, %v1267
    %v1317 = vadd.f32 %v1008, %v1271
    %v1318 = vadd.f32 %v1012, %v1267
    %v1319 = vadd.f32 %v1014, %v1271
    %v1320 = vadd.f32 %v1018, %v1267
    %v1321 = vadd.f32 %v1020, %v1271
    %v1322 = vadd.f32 %v1024, %v1267
    %v1323 = vadd.f32 %v1026, %v1271
    %v1324 = vadd.f32 %v1030, %v1267
    %v1325 = vadd.f32 %v1032, %v1271
    %v1326 = vadd.f32 %v1036, %v1267
    %v1327 = vadd.f32 %v1038, %v1271
    %v1328 = vadd.f32 %v1042, %v1267
    %v1329 = vadd.f32 %v1044, %v1271
    %v1330 = vadd.f32 %v1048, %v1267
    %v1331 = vadd.f32 %v1050, %v1271
    %v1332 = vadd.f32 %v1054, %v1267
    %v1333 = vadd.f32 %v1056, %v1271
    %v1334 = vadd.f32 %v1060, %v1267
    %v1335 = vadd.f32 %v1062, %v1271
    %v1336 = vadd.f32 %v1066, %v1267
    %v1337 = vadd.f32 %v1068, %v1271
    %v1338 = vadd.f32 %v1072, %v1267
    %v1339 = vadd.f32 %v1074, %v1271
    %v1340 = vadd.f32 %v1078, %v1267
    %v1341 = vadd.f32 %v1080, %v1271
    %v1342 = vadd.f32 %v1084, %v1267
    %v1343 = vadd.f32 %v1086, %v1271
    %v1344 = vadd.f32 %v1090, %v1267
    %v1345 = vadd.f32 %v1092, %v1271
    %v1346 = vadd.f32 %v1096, %v1267
    %v1347 = vadd.f32 %v1098, %v1271
    %v1348 = vadd.f32 %v1102, %v1267
    %v1349 = vadd.f32 %v1104, %v1271
    %v1350 = vadd.f32 %v1108, %v1267
    %v1351 = vadd.f32 %v1110, %v1271
    %v1352 = vadd.f32 %v1114, %v1267
    %v1353 = vadd.f32 %v1116, %v1271
    %v1354 = vadd.f32 %v1120, %v1267
    %v1355 = vadd.f32 %v1122, %v1271
    %v1356 = vadd.f32 %v1126, %v1267
    %v1357 = vadd.f32 %v1128, %v1271
    %v1358 = vadd.f32 %v1132, %v1267
    %v1359 = vadd.f32 %v1134, %v1271
    %v1360 = vadd.f32 %v1138, %v1267
    %v1361 = vadd.f32 %v1140, %v1271
    %v1362 = vadd.f32 %v1144, %v1267
    %v1363 = vadd.f32 %v1146, %v1271
    %v1364 = vadd.f32 %v1150, %v1267
    %v1365 = vadd.f32 %v1152, %v1271
    %v1366 = vadd.f32 %v1156, %v1267
    %v1367 = vadd.f32 %v1158, %v1271
    %v1368 = vadd.f32 %v1162, %v1267
    %v1369 = vadd.f32 %v1164, %v1271
    %v1370 = vadd.f32 %v1168, %v1267
    %v1371 = vadd.f32 %v1170, %v1271
    %v1372 = vadd.f32 %v1174, %v1267
    %v1373 = vadd.f32 %v1176, %v1271
    %v1374 = vadd.f32 %v1180, %v1267
    %v1375 = vadd.f32 %v1182, %v1271
    %v1376 = vadd.f32 %v1186, %v1267
    %v1377 = vadd.f32 %v1188, %v1271
    %v1378 = vadd.f32 %v1192, %v1267
    %v1379 = vadd.f32 %v1194, %v1271
    %v1380 = vadd.f32 %v1198, %v1267
    %v1381 = vadd.f32 %v1200, %v1271
    %v1382 = vadd.f32 %v1204, %v1267
    %v1383 = vadd.f32 %v1206, %v1271
    %v1384 = vadd.f32 %v1210, %v1267
    %v1385 = vadd.f32 %v1212, %v1271
    %v1386 = vadd.f32 %v1216, %v1267
    %v1387 = vadd.f32 %v1218, %v1271
    %v1388 = vadd.f32 %v1222, %v1267
    %v1389 = vadd.f32 %v1224, %v1271
    %v1390 = vadd.f32 %v1228, %v1267
    %v1391 = vadd.f32 %v1230, %v1271
    %v1392 = vadd.f32 %v1234, %v1267
    %v1393 = vadd.f32 %v1236, %v1271
    %v1394 = vadd.f32 %v1240, %v1267
    %v1395 = vadd.f32 %v1242, %v1271
    %v1396 = vadd.f32 %v1246, %v1267
    %v1397 = vadd.f32 %v1248, %v1271
    %v1398 = vadd.f32 %v1252, %v1267
    %v1399 = vadd.f32 %v1254, %v1271
    %v1400 = vadd.f32 %v1258, %v1267
    %v1401 = vadd.f32 %v1260, %v1271
    %v1402 = vmul.f32 %v1274, 0.5
    %v1403 = vmul.f32 %v1276, 0.5
    %v1404 = vmul.f32 %v1278, 0.5
    %v1405 = vmul.f32 %v1280, 0.5
    %v1406 = vmul.f32 %v1282, 0.5
    %v1407 = vmul.f32 %v1284, 0.5
    %v1408 = vmul.f32 %v1286, 0.5
    %v1409 = vmul.f32 %v1288, 0.5
    %v1410 = vmul.f32 %v1290, 0.5
    %v1411 = vmul.f32 %v1292, 0.5
    %v1412 = vmul.f32 %v1294, 0.5
    %v1413 = vmul.f32 %v1296, 0.5
    %v1414 = vmul.f32 %v1298, 0.5
    %v1415 = vmul.f32 %v1300, 0.5
    %v1416 = vmul.f32 %v1302, 0.5
    %v1417 = vmul.f32 %v1304, 0.5
    %v1418 = vmul.f32 %v1306, 0.5
    %v1419 = vmul.f32 %v1308, 0.5
    %v1420 = vmul.f32 %v1310, 0.5
    %v1421 = vmul.f32 %v1312, 0.5
    %v1422 = vmul.f32 %v1314, 0.5
    %v1423 = vmul.f32 %v1316, 0.5
    %v1424 = vmul.f32 %v1318, 0.5
    %v1425 = vmul.f32 %v1320, 0.5
    %v1426 = vmul.f32 %v1322, 0.5
    %v1427 = vmul.f32 %v1324, 0.5
    %v1428 = vmul.f32 %v1326, 0.5
    %v1429 = vmul.f32 %v1328, 0.5
    %v1430 = vmul.f32 %v1330, 0.5
    %v1431 = vmul.f32 %v1332, 0.5
    %v1432 = vmul.f32 %v1334, 0.5
    %v1433 = vmul.f32 %v1336, 0.5
    %v1434 = vmul.f32 %v1338, 0.5
    %v1435 = vmul.f32 %v1340, 0.5
    %v1436 = vmul.f32 %v1342, 0.5
    %v1437 = vmul.f32 %v1344, 0.5
    %v1438 = vmul.f32 %v1346, 0.5
    %v1439 = vmul.f32 %v1348, 0.5
    %v1440 = vmul.f32 %v1350, 0.5
    %v1441 = vmul.f32 %v1352, 0.5
    %v1442 = vmul.f32 %v1354, 0.5
    %v1443 = vmul.f32 %v1356, 0.5
    %v1444 = vmul.f32 %v1358, 0.5
    %v1445 = vmul.f32 %v1360, 0.5
    %v1446 = vmul.f32 %v1362, 0.5
    %v1447 = vmul.f32 %v1364, 0.5
    %v1448 = vmul.f32 %v1366, 0.5
    %v1449 = vmul.f32 %v1368, 0.5
    %v1450 = vmul.f32 %v1370, 0.5
    %v1451 = vmul.f32 %v1372, 0.5
    %v1452 = vmul.f32 %v1374, 0.5
    %v1453 = vmul.f32 %v1376, 0.5
    %v1454 = vmul.f32 %v1378, 0.5
    %v1455 = vmul.f32 %v1380, 0.5
    %v1456 = vmul.f32 %v1382, 0.5
    %v1457 = vmul.f32 %v1384, 0.5
    %v1458 = vmul.f32 %v1386, 0.5
    %v1459 = vmul.f32 %v1388, 0.5
    %v1460 = vmul.f32 %v1390, 0.5
    %v1461 = vmul.f32 %v1392, 0.5
    %v1462 = vmul.f32 %v1394, 0.5
    %v1463 = vmul.f32 %v1396, 0.5
    %v1464 = vmul.f32 %v1398, 0.5
    %v1465 = vmul.f32 %v1400, 0.5
    %v1466 = vmul.f32 %v1274, %v1274
    %v1467 = vmul.f32 %v1276, %v1276
    %v1468 = vmul.f32 %v1278, %v1278
    %v1469 = vmul.f32 %v1280, %v1280
    %v1470 = vmul.f32 %v1282, %v1282
    %v1471 = vmul.f32 %v1284, %v1284
    %v1472 = vmul.f32 %v1286, %v1286
    %v1473 = vmul.f32 %v1288, %v1288
    %v1474 = vmul.f32 %v1290, %v1290
    %v1475 = vmul.f32 %v1292, %v1292
    %v1476 = vmul.f32 %v1294, %v1294
    %v1477 = vmul.f32 %v1296, %v1296
    %v1478 = vmul.f32 %v1298, %v1298
    %v1479 = vmul.f32 %v1300, %v1300
    %v1480 = vmul.f32 %v1302, %v1302
    %v1481 = vmul.f32 %v1304, %v1304
    %v1482 = vmul.f32 %v1306, %v1306
    %v1483 = vmul.f32 %v1308, %v1308
    %v1484 = vmul.f32 %v1310, %v1310
    %v1485 = vmul.f32 %v1312, %v1312
    %v1486 = vmul.f32 %v1314, %v1314
    %v1487 = vmul.f32 %v1316, %v1316
    %v1488 = vmul.f32 %v1318, %v1318
    %v1489 = vmul.f32 %v1320, %v1320
    %v1490 = vmul.f32 %v1322, %v1322
    %v1491 = vmul.f32 %v1324, %v1324
    %v1492 = vmul.f32 %v1326, %v1326
    %v1493 = vmul.f32 %v1328, %v1328
    %v1494 = vmul.f32 %v1330, %v1330
    %v1495 = vmul.f32 %v1332, %v1332
    %v1496 = vmul.f32 %v1334, %v1334
    %v1497 = vmul.f32 %v1336, %v1336
    %v1498 = vmul.f32 %v1338, %v1338
    %v1499 = vmul.f32 %v1340, %v1340
    %v1500 = vmul.f32 %v1342, %v1342
    %v1501 = vmul.f32 %v1344, %v1344
    %v1502 = vmul.f32 %v1346, %v1346
    %v1503 = vmul.f32 %v1348, %v1348
    %v1504 = vmul.f32 %v1350, %v1350
    %v1505 = vmul.f32 %v1352, %v1352
    %v1506 = vmul.f32 %v1354, %v1354
    %v1507 = vmul.f32 %v1356, %v1356
    %v1508 = vmul.f32 %v1358, %v1358
    %v1509 = vmul.f32 %v1360, %v1360
    %v1510 = vmul.f32 %v1362, %v1362
    %v1511 = vmul.f32 %v1364, %v1364
    %v1512 = vmul.f32 %v1366, %v1366
    %v1513 = vmul.f32 %v1368, %v1368
    %v1514 = vmul.f32 %v1370, %v1370
    %v1515 = vmul.f32 %v1372, %v1372
    %v1516 = vmul.f32 %v1374, %v1374
    %v1517 = vmul.f32 %v1376, %v1376
    %v1518 = vmul.f32 %v1378, %v1378
    %v1519 = vmul.f32 %v1380, %v1380
    %v1520 = vmul.f32 %v1382, %v1382
    %v1521 = vmul.f32 %v1384, %v1384
    %v1522 = vmul.f32 %v1386, %v1386
    %v1523 = vmul.f32 %v1388, %v1388
    %v1524 = vmul.f32 %v1390, %v1390
    %v1525 = vmul.f32 %v1392, %v1392
    %v1526 = vmul.f32 %v1394, %v1394
    %v1527 = vmul.f32 %v1396, %v1396
    %v1528 = vmul.f32 %v1398, %v1398
    %v1529 = vmul.f32 %v1400, %v1400
    %v1530 = vmul.f32 %v1466, %v1274
    %v1531 = vmul.f32 %v1467, %v1276
    %v1532 = vmul.f32 %v1468, %v1278
    %v1533 = vmul.f32 %v1469, %v1280
    %v1534 = vmul.f32 %v1470, %v1282
    %v1535 = vmul.f32 %v1471, %v1284
    %v1536 = vmul.f32 %v1472, %v1286
    %v1537 = vmul.f32 %v1473, %v1288
    %v1538 = vmul.f32 %v1474, %v1290
    %v1539 = vmul.f32 %v1475, %v1292
    %v1540 = vmul.f32 %v1476, %v1294
    %v1541 = vmul.f32 %v1477, %v1296
    %v1542 = vmul.f32 %v1478, %v1298
    %v1543 = vmul.f32 %v1479, %v1300
    %v1544 = vmul.f32 %v1480, %v1302
    %v1545 = vmul.f32 %v1481, %v1304
    %v1546 = vmul.f32 %v1482, %v1306
    %v1547 = vmul.f32 %v1483, %v1308
    %v1548 = vmul.f32 %v1484, %v1310
    %v1549 = vmul.f32 %v1485, %v1312
    %v1550 = vmul.f32 %v1486, %v1314
    %v1551 = vmul.f32 %v1487, %v1316
    %v1552 = vmul.f32 %v1488, %v1318
    %v1553 = vmul.f32 %v1489, %v1320
    %v1554 = vmul.f32 %v1490, %v1322
    %v1555 = vmul.f32 %v1491, %v1324
    %v1556 = vmul.f32 %v1492, %v1326
    %v1557 = vmul.f32 %v1493, %v1328
    %v1558 = vmul.f32 %v1494, %v1330
    %v1559 = vmul.f32 %v1495, %v1332
    %v1560 = vmul.f32 %v1496, %v1334
    %v1561 = vmul.f32 %v1497, %v1336
    %v1562 = vmul.f32 %v1498, %v1338
    %v1563 = vmul.f32 %v1499, %v1340
    %v1564 = vmul.f32 %v1500, %v1342
    %v1565 = vmul.f32 %v1501, %v1344
    %v1566 = vmul.f32 %v1502, %v1346
    %v1567 = vmul.f32 %v1503, %v1348
    %v1568 = vmul.f32 %v1504, %v1350
    %v1569 = vmul.f32 %v1505, %v1352
    %v1570 = vmul.f32 %v1506, %v1354
    %v1571 = vmul.f32 %v1507, %v1356
    %v1572 = vmul.f32 %v1508, %v1358
    %v1573 = vmul.f32 %v1509, %v1360
    %v1574 = vmul.f32 %v1510, %v1362
    %v1575 = vmul.f32 %v1511, %v1364
    %v1576 = vmul.f32 %v1512, %v1366
    %v1577 = vmul.f32 %v1513, %v1368
    %v1578 = vmul.f32 %v1514, %v1370
    %v1579 = vmul.f32 %v1515, %v1372
    %v1580 = vmul.f32 %v1516, %v1374
    %v1581 = vmul.f32 %v1517, %v1376
    %v1582 = vmul.f32 %v1518, %v1378
    %v1583 = vmul.f32 %v1519, %v1380
    %v1584 = vmul.f32 %v1520, %v1382
    %v1585 = vmul.f32 %v1521, %v1384
    %v1586 = vmul.f32 %v1522, %v1386
    %v1587 = vmul.f32 %v1523, %v1388
    %v1588 = vmul.f32 %v1524, %v1390
    %v1589 = vmul.f32 %v1525, %v1392
    %v1590 = vmul.f32 %v1526, %v1394
    %v1591 = vmul.f32 %v1527, %v1396
    %v1592 = vmul.f32 %v1528, %v1398
    %v1593 = vmul.f32 %v1529, %v1400
    %v1594 = vmul.f32 %v1530, 0.044715
    %v1595 = vmul.f32 %v1531, 0.044715
    %v1596 = vmul.f32 %v1532, 0.044715
    %v1597 = vmul.f32 %v1533, 0.044715
    %v1598 = vmul.f32 %v1534, 0.044715
    %v1599 = vmul.f32 %v1535, 0.044715
    %v1600 = vmul.f32 %v1536, 0.044715
    %v1601 = vmul.f32 %v1537, 0.044715
    %v1602 = vmul.f32 %v1538, 0.044715
    %v1603 = vmul.f32 %v1539, 0.044715
    %v1604 = vmul.f32 %v1540, 0.044715
    %v1605 = vmul.f32 %v1541, 0.044715
    %v1606 = vmul.f32 %v1542, 0.044715
    %v1607 = vmul.f32 %v1543, 0.044715
    %v1608 = vmul.f32 %v1544, 0.044715
    %v1609 = vmul.f32 %v1545, 0.044715
    %v1610 = vmul.f32 %v1546, 0.044715
    %v1611 = vmul.f32 %v1547, 0.044715
    %v1612 = vmul.f32 %v1548, 0.044715
    %v1613 = vmul.f32 %v1549, 0.044715
    %v1614 = vmul.f32 %v1550, 0.044715
    %v1615 = vmul.f32 %v1551, 0.044715
    %v1616 = vmul.f32 %v1552, 0.044715
    %v1617 = vmul.f32 %v1553, 0.044715
    %v1618 = vmul.f32 %v1554, 0.044715
    %v1619 = vmul.f32 %v1555, 0.044715
    %v1620 = vmul.f32 %v1556, 0.044715
    %v1621 = vmul.f32 %v1557, 0.044715
    %v1622 = vmul.f32 %v1558, 0.044715
    %v1623 = vmul.f32 %v1559, 0.044715
    %v1624 = vmul.f32 %v1560, 0.044715
    %v1625 = vmul.f32 %v1561, 0.044715
    %v1626 = vmul.f32 %v1562, 0.044715
    %v1627 = vmul.f32 %v1563, 0.044715
    %v1628 = vmul.f32 %v1564, 0.044715
    %v1629 = vmul.f32 %v1565, 0.044715
    %v1630 = vmul.f32 %v1566, 0.044715
    %v1631 = vmul.f32 %v1567, 0.044715
    %v1632 = vmul.f32 %v1568, 0.044715
    %v1633 = vmul.f32 %v1569, 0.044715
    %v1634 = vmul.f32 %v1570, 0.044715
    %v1635 = vmul.f32 %v1571, 0.044715
    %v1636 = vmul.f32 %v1572, 0.044715
    %v1637 = vmul.f32 %v1573, 0.044715
    %v1638 = vmul.f32 %v1574, 0.044715
    %v1639 = vmul.f32 %v1575, 0.044715
    %v1640 = vmul.f32 %v1576, 0.044715
    %v1641 = vmul.f32 %v1577, 0.044715
    %v1642 = vmul.f32 %v1578, 0.044715
    %v1643 = vmul.f32 %v1579, 0.044715
    %v1644 = vmul.f32 %v1580, 0.044715
    %v1645 = vmul.f32 %v1581, 0.044715
    %v1646 = vmul.f32 %v1582, 0.044715
    %v1647 = vmul.f32 %v1583, 0.044715
    %v1648 = vmul.f32 %v1584, 0.044715
    %v1649 = vmul.f32 %v1585, 0.044715
    %v1650 = vmul.f32 %v1586, 0.044715
    %v1651 = vmul.f32 %v1587, 0.044715
    %v1652 = vmul.f32 %v1588, 0.044715
    %v1653 = vmul.f32 %v1589, 0.044715
    %v1654 = vmul.f32 %v1590, 0.044715
    %v1655 = vmul.f32 %v1591, 0.044715
    %v1656 = vmul.f32 %v1592, 0.044715
    %v1657 = vmul.f32 %v1593, 0.044715
    %v1658 = vadd.f32 %v1274, %v1594
    %v1659 = vadd.f32 %v1276, %v1595
    %v1660 = vadd.f32 %v1278, %v1596
    %v1661 = vadd.f32 %v1280, %v1597
    %v1662 = vadd.f32 %v1282, %v1598
    %v1663 = vadd.f32 %v1284, %v1599
    %v1664 = vadd.f32 %v1286, %v1600
    %v1665 = vadd.f32 %v1288, %v1601
    %v1666 = vadd.f32 %v1290, %v1602
    %v1667 = vadd.f32 %v1292, %v1603
    %v1668 = vadd.f32 %v1294, %v1604
    %v1669 = vadd.f32 %v1296, %v1605
    %v1670 = vadd.f32 %v1298, %v1606
    %v1671 = vadd.f32 %v1300, %v1607
    %v1672 = vadd.f32 %v1302, %v1608
    %v1673 = vadd.f32 %v1304, %v1609
    %v1674 = vadd.f32 %v1306, %v1610
    %v1675 = vadd.f32 %v1308, %v1611
    %v1676 = vadd.f32 %v1310, %v1612
    %v1677 = vadd.f32 %v1312, %v1613
    %v1678 = vadd.f32 %v1314, %v1614
    %v1679 = vadd.f32 %v1316, %v1615
    %v1680 = vadd.f32 %v1318, %v1616
    %v1681 = vadd.f32 %v1320, %v1617
    %v1682 = vadd.f32 %v1322, %v1618
    %v1683 = vadd.f32 %v1324, %v1619
    %v1684 = vadd.f32 %v1326, %v1620
    %v1685 = vadd.f32 %v1328, %v1621
    %v1686 = vadd.f32 %v1330, %v1622
    %v1687 = vadd.f32 %v1332, %v1623
    %v1688 = vadd.f32 %v1334, %v1624
    %v1689 = vadd.f32 %v1336, %v1625
    %v1690 = vadd.f32 %v1338, %v1626
    %v1691 = vadd.f32 %v1340, %v1627
    %v1692 = vadd.f32 %v1342, %v1628
    %v1693 = vadd.f32 %v1344, %v1629
    %v1694 = vadd.f32 %v1346, %v1630
    %v1695 = vadd.f32 %v1348, %v1631
    %v1696 = vadd.f32 %v1350, %v1632
    %v1697 = vadd.f32 %v1352, %v1633
    %v1698 = vadd.f32 %v1354, %v1634
    %v1699 = vadd.f32 %v1356, %v1635
    %v1700 = vadd.f32 %v1358, %v1636
    %v1701 = vadd.f32 %v1360, %v1637
    %v1702 = vadd.f32 %v1362, %v1638
    %v1703 = vadd.f32 %v1364, %v1639
    %v1704 = vadd.f32 %v1366, %v1640
    %v1705 = vadd.f32 %v1368, %v1641
    %v1706 = vadd.f32 %v1370, %v1642
    %v1707 = vadd.f32 %v1372, %v1643
    %v1708 = vadd.f32 %v1374, %v1644
    %v1709 = vadd.f32 %v1376, %v1645
    %v1710 = vadd.f32 %v1378, %v1646
    %v1711 = vadd.f32 %v1380, %v1647
    %v1712 = vadd.f32 %v1382, %v1648
    %v1713 = vadd.f32 %v1384, %v1649
    %v1714 = vadd.f32 %v1386, %v1650
    %v1715 = vadd.f32 %v1388, %v1651
    %v1716 = vadd.f32 %v1390, %v1652
    %v1717 = vadd.f32 %v1392, %v1653
    %v1718 = vadd.f32 %v1394, %v1654
    %v1719 = vadd.f32 %v1396, %v1655
    %v1720 = vadd.f32 %v1398, %v1656
    %v1721 = vadd.f32 %v1400, %v1657
    %v1722 = vmul.f32 %v1658, 0.7978846
    %v1723 = vmul.f32 %v1659, 0.7978846
    %v1724 = vmul.f32 %v1660, 0.7978846
    %v1725 = vmul.f32 %v1661, 0.7978846
    %v1726 = vmul.f32 %v1662, 0.7978846
    %v1727 = vmul.f32 %v1663, 0.7978846
    %v1728 = vmul.f32 %v1664, 0.7978846
    %v1729 = vmul.f32 %v1665, 0.7978846
    %v1730 = vmul.f32 %v1666, 0.7978846
    %v1731 = vmul.f32 %v1667, 0.7978846
    %v1732 = vmul.f32 %v1668, 0.7978846
    %v1733 = vmul.f32 %v1669, 0.7978846
    %v1734 = vmul.f32 %v1670, 0.7978846
    %v1735 = vmul.f32 %v1671, 0.7978846
    %v1736 = vmul.f32 %v1672, 0.7978846
    %v1737 = vmul.f32 %v1673, 0.7978846
    %v1738 = vmul.f32 %v1674, 0.7978846
    %v1739 = vmul.f32 %v1675, 0.7978846
    %v1740 = vmul.f32 %v1676, 0.7978846
    %v1741 = vmul.f32 %v1677, 0.7978846
    %v1742 = vmul.f32 %v1678, 0.7978846
    %v1743 = vmul.f32 %v1679, 0.7978846
    %v1744 = vmul.f32 %v1680, 0.7978846
    %v1745 = vmul.f32 %v1681, 0.7978846
    %v1746 = vmul.f32 %v1682, 0.7978846
    %v1747 = vmul.f32 %v1683, 0.7978846
    %v1748 = vmul.f32 %v1684, 0.7978846
    %v1749 = vmul.f32 %v1685, 0.7978846
    %v1750 = vmul.f32 %v1686, 0.7978846
    %v1751 = vmul.f32 %v1687, 0.7978846
    %v1752 = vmul.f32 %v1688, 0.7978846
    %v1753 = vmul.f32 %v1689, 0.7978846
    %v1754 = vmul.f32 %v1690, 0.7978846
    %v1755 = vmul.f32 %v1691, 0.7978846
    %v1756 = vmul.f32 %v1692, 0.7978846
    %v1757 = vmul.f32 %v1693, 0.7978846
    %v1758 = vmul.f32 %v1694, 0.7978846
    %v1759 = vmul.f32 %v1695, 0.7978846
    %v1760 = vmul.f32 %v1696, 0.7978846
    %v1761 = vmul.f32 %v1697, 0.7978846
    %v1762 = vmul.f32 %v1698, 0.7978846
    %v1763 = vmul.f32 %v1699, 0.7978846
    %v1764 = vmul.f32 %v1700, 0.7978846
    %v1765 = vmul.f32 %v1701, 0.7978846
    %v1766 = vmul.f32 %v1702, 0.7978846
    %v1767 = vmul.f32 %v1703, 0.7978846
    %v1768 = vmul.f32 %v1704, 0.7978846
    %v1769 = vmul.f32 %v1705, 0.7978846
    %v1770 = vmul.f32 %v1706, 0.7978846
    %v1771 = vmul.f32 %v1707, 0.7978846
    %v1772 = vmul.f32 %v1708, 0.7978846
    %v1773 = vmul.f32 %v1709, 0.7978846
    %v1774 = vmul.f32 %v1710, 0.7978846
    %v1775 = vmul.f32 %v1711, 0.7978846
    %v1776 = vmul.f32 %v1712, 0.7978846
    %v1777 = vmul.f32 %v1713, 0.7978846
    %v1778 = vmul.f32 %v1714, 0.7978846
    %v1779 = vmul.f32 %v1715, 0.7978846
    %v1780 = vmul.f32 %v1716, 0.7978846
    %v1781 = vmul.f32 %v1717, 0.7978846
    %v1782 = vmul.f32 %v1718, 0.7978846
    %v1783 = vmul.f32 %v1719, 0.7978846
    %v1784 = vmul.f32 %v1720, 0.7978846
    %v1785 = vmul.f32 %v1721, 0.7978846
    %v1786 = vtanh.pop %v1722
    %v1787 = vtanh.pop %v1723
    %v1788 = vtanh.pop %v1724
    %v1789 = vtanh.pop %v1725
    %v1790 = vtanh.pop %v1726
    %v1791 = vtanh.pop %v1727
    %v1792 = vtanh.pop %v1728
    %v1793 = vtanh.pop %v1729
    %v1794 = vtanh.pop %v1730
    %v1795 = vtanh.pop %v1731
    %v1796 = vtanh.pop %v1732
    %v1797 = vtanh.pop %v1733
    %v1798 = vtanh.pop %v1734
    %v1799 = vtanh.pop %v1735
    %v1800 = vtanh.pop %v1736
    %v1801 = vtanh.pop %v1737
    %v1802 = vtanh.pop %v1738
    %v1803 = vtanh.pop %v1739
    %v1804 = vtanh.pop %v1740
    %v1805 = vtanh.pop %v1741
    %v1806 = vtanh.pop %v1742
    %v1807 = vtanh.pop %v1743
    %v1808 = vtanh.pop %v1744
    %v1809 = vtanh.pop %v1745
    %v1810 = vtanh.pop %v1746
    %v1811 = vtanh.pop %v1747
    %v1812 = vtanh.pop %v1748
    %v1813 = vtanh.pop %v1749
    %v1814 = vtanh.pop %v1750
    %v1815 = vtanh.pop %v1751
    %v1816 = vtanh.pop %v1752
    %v1817 = vtanh.pop %v1753
    %v1818 = vtanh.pop %v1754
    %v1819 = vtanh.pop %v1755
    %v1820 = vtanh.pop %v1756
    %v1821 = vtanh.pop %v1757
    %v1822 = vtanh.pop %v1758
    %v1823 = vtanh.pop %v1759
    %v1824 = vtanh.pop %v1760
    %v1825 = vtanh.pop %v1761
    %v1826 = vtanh.pop %v1762
    %v1827 = vtanh.pop %v1763
    %v1828 = vtanh.pop %v1764
    %v1829 = vtanh.pop %v1765
    %v1830 = vtanh.pop %v1766
    %v1831 = vtanh.pop %v1767
    %v1832 = vtanh.pop %v1768
    %v1833 = vtanh.pop %v1769
    %v1834 = vtanh.pop %v1770
    %v1835 = vtanh.pop %v1771
    %v1836 = vtanh.pop %v1772
    %v1837 = vtanh.pop %v1773
    %v1838 = vtanh.pop %v1774
    %v1839 = vtanh.pop %v1775
    %v1840 = vtanh.pop %v1776
    %v1841 = vtanh.pop %v1777
    %v1842 = vtanh.pop %v1778
    %v1843 = vtanh.pop %v1779
    %v1844 = vtanh.pop %v1780
    %v1845 = vtanh.pop %v1781
    %v1846 = vtanh.pop %v1782
    %v1847 = vtanh.pop %v1783
    %v1848 = vtanh.pop %v1784
    %v1849 = vtanh.pop %v1785
    %v1850 = vadd.f32 %v1786, 1.0
    %v1851 = vadd.f32 %v1787, 1.0
    %v1852 = vadd.f32 %v1788, 1.0
    %v1853 = vadd.f32 %v1789, 1.0
    %v1854 = vadd.f32 %v1790, 1.0
    %v1855 = vadd.f32 %v1791, 1.0
    %v1856 = vadd.f32 %v1792, 1.0
    %v1857 = vadd.f32 %v1793, 1.0
    %v1858 = vadd.f32 %v1794, 1.0
    %v1859 = vadd.f32 %v1795, 1.0
    %v1860 = vadd.f32 %v1796, 1.0
    %v1861 = vadd.f32 %v1797, 1.0
    %v1862 = vadd.f32 %v1798, 1.0
    %v1863 = vadd.f32 %v1799, 1.0
    %v1864 = vadd.f32 %v1800, 1.0
    %v1865 = vadd.f32 %v1801, 1.0
    %v1866 = vadd.f32 %v1802, 1.0
    %v1867 = vadd.f32 %v1803, 1.0
    %v1868 = vadd.f32 %v1804, 1.0
    %v1869 = vadd.f32 %v1805, 1.0
    %v1870 = vadd.f32 %v1806, 1.0
    %v1871 = vadd.f32 %v1807, 1.0
    %v1872 = vadd.f32 %v1808, 1.0
    %v1873 = vadd.f32 %v1809, 1.0
    %v1874 = vadd.f32 %v1810, 1.0
    %v1875 = vadd.f32 %v1811, 1.0
    %v1876 = vadd.f32 %v1812, 1.0
    %v1877 = vadd.f32 %v1813, 1.0
    %v1878 = vadd.f32 %v1814, 1.0
    %v1879 = vadd.f32 %v1815, 1.0
    %v1880 = vadd.f32 %v1816, 1.0
    %v1881 = vadd.f32 %v1817, 1.0
    %v1882 = vadd.f32 %v1818, 1.0
    %v1883 = vadd.f32 %v1819, 1.0
    %v1884 = vadd.f32 %v1820, 1.0
    %v1885 = vadd.f32 %v1821, 1.0
    %v1886 = vadd.f32 %v1822, 1.0
    %v1887 = vadd.f32 %v1823, 1.0
    %v1888 = vadd.f32 %v1824, 1.0
    %v1889 = vadd.f32 %v1825, 1.0
    %v1890 = vadd.f32 %v1826, 1.0
    %v1891 = vadd.f32 %v1827, 1.0
    %v1892 = vadd.f32 %v1828, 1.0
    %v1893 = vadd.f32 %v1829, 1.0
    %v1894 = vadd.f32 %v1830, 1.0
    %v1895 = vadd.f32 %v1831, 1.0
    %v1896 = vadd.f32 %v1832, 1.0
    %v1897 = vadd.f32 %v1833, 1.0
    %v1898 = vadd.f32 %v1834, 1.0
    %v1899 = vadd.f32 %v1835, 1.0
    %v1900 = vadd.f32 %v1836, 1.0
    %v1901 = vadd.f32 %v1837, 1.0
    %v1902 = vadd.f32 %v1838, 1.0
    %v1903 = vadd.f32 %v1839, 1.0
    %v1904 = vadd.f32 %v1840, 1.0
    %v1905 = vadd.f32 %v1841, 1.0
    %v1906 = vadd.f32 %v1842, 1.0
    %v1907 = vadd.f32 %v1843, 1.0
    %v1908 = vadd.f32 %v1844, 1.0
    %v1909 = vadd.f32 %v1845, 1.0
    %v1910 = vadd.f32 %v1846, 1.0
    %v1911 = vadd.f32 %v1847, 1.0
    %v1912 = vadd.f32 %v1848, 1.0
    %v1913 = vadd.f32 %v1849, 1.0
    %v1914 = vmul.f32 %v1402, %v1850
    %v1915 = vmul.f32 %v1403, %v1851
    %v1916 = vmul.f32 %v1404, %v1852
    %v1917 = vmul.f32 %v1405, %v1853
    %v1918 = vmul.f32 %v1406, %v1854
    %v1919 = vmul.f32 %v1407, %v1855
    %v1920 = vmul.f32 %v1408, %v1856
    %v1921 = vmul.f32 %v1409, %v1857
    %v1922 = vmul.f32 %v1410, %v1858
    %v1923 = vmul.f32 %v1411, %v1859
    %v1924 = vmul.f32 %v1412, %v1860
    %v1925 = vmul.f32 %v1413, %v1861
    %v1926 = vmul.f32 %v1414, %v1862
    %v1927 = vmul.f32 %v1415, %v1863
    %v1928 = vmul.f32 %v1416, %v1864
    %v1929 = vmul.f32 %v1417, %v1865
    %v1930 = vmul.f32 %v1418, %v1866
    %v1931 = vmul.f32 %v1419, %v1867
    %v1932 = vmul.f32 %v1420, %v1868
    %v1933 = vmul.f32 %v1421, %v1869
    %v1934 = vmul.f32 %v1422, %v1870
    %v1935 = vmul.f32 %v1423, %v1871
    %v1936 = vmul.f32 %v1424, %v1872
    %v1937 = vmul.f32 %v1425, %v1873
    %v1938 = vmul.f32 %v1426, %v1874
    %v1939 = vmul.f32 %v1427, %v1875
    %v1940 = vmul.f32 %v1428, %v1876
    %v1941 = vmul.f32 %v1429, %v1877
    %v1942 = vmul.f32 %v1430, %v1878
    %v1943 = vmul.f32 %v1431, %v1879
    %v1944 = vmul.f32 %v1432, %v1880
    %v1945 = vmul.f32 %v1433, %v1881
    %v1946 = vmul.f32 %v1434, %v1882
    %v1947 = vmul.f32 %v1435, %v1883
    %v1948 = vmul.f32 %v1436, %v1884
    %v1949 = vmul.f32 %v1437, %v1885
    %v1950 = vmul.f32 %v1438, %v1886
    %v1951 = vmul.f32 %v1439, %v1887
    %v1952 = vmul.f32 %v1440, %v1888
    %v1953 = vmul.f32 %v1441, %v1889
    %v1954 = vmul.f32 %v1442, %v1890
    %v1955 = vmul.f32 %v1443, %v1891
    %v1956 = vmul.f32 %v1444, %v1892
    %v1957 = vmul.f32 %v1445, %v1893
    %v1958 = vmul.f32 %v1446, %v1894
    %v1959 = vmul.f32 %v1447, %v1895
    %v1960 = vmul.f32 %v1448, %v1896
    %v1961 = vmul.f32 %v1449, %v1897
    %v1962 = vmul.f32 %v1450, %v1898
    %v1963 = vmul.f32 %v1451, %v1899
    %v1964 = vmul.f32 %v1452, %v1900
    %v1965 = vmul.f32 %v1453, %v1901
    %v1966 = vmul.f32 %v1454, %v1902
    %v1967 = vmul.f32 %v1455, %v1903
    %v1968 = vmul.f32 %v1456, %v1904
    %v1969 = vmul.f32 %v1457, %v1905
    %v1970 = vmul.f32 %v1458, %v1906
    %v1971 = vmul.f32 %v1459, %v1907
    %v1972 = vmul.f32 %v1460, %v1908
    %v1973 = vmul.f32 %v1461, %v1909
    %v1974 = vmul.f32 %v1462, %v1910
    %v1975 = vmul.f32 %v1463, %v1911
    %v1976 = vmul.f32 %v1464, %v1912
    %v1977 = vmul.f32 %v1465, %v1913
    %v1978 = vxor.u32 %v1275, 2147483648
    %v1979 = vxor.u32 %v1277, 2147483648
    %v1980 = vxor.u32 %v1279, 2147483648
    %v1981 = vxor.u32 %v1281, 2147483648
    %v1982 = vxor.u32 %v1283, 2147483648
    %v1983 = vxor.u32 %v1285, 2147483648
    %v1984 = vxor.u32 %v1287, 2147483648
    %v1985 = vxor.u32 %v1289, 2147483648
    %v1986 = vxor.u32 %v1291, 2147483648
    %v1987 = vxor.u32 %v1293, 2147483648
    %v1988 = vxor.u32 %v1295, 2147483648
    %v1989 = vxor.u32 %v1297, 2147483648
    %v1990 = vxor.u32 %v1299, 2147483648
    %v1991 = vxor.u32 %v1301, 2147483648
    %v1992 = vxor.u32 %v1303, 2147483648
    %v1993 = vxor.u32 %v1305, 2147483648
    %v1994 = vxor.u32 %v1307, 2147483648
    %v1995 = vxor.u32 %v1309, 2147483648
    %v1996 = vxor.u32 %v1311, 2147483648
    %v1997 = vxor.u32 %v1313, 2147483648
    %v1998 = vxor.u32 %v1315, 2147483648
    %v1999 = vxor.u32 %v1317, 2147483648
    %v2000 = vxor.u32 %v1319, 2147483648
    %v2001 = vxor.u32 %v1321, 2147483648
    %v2002 = vxor.u32 %v1323, 2147483648
    %v2003 = vxor.u32 %v1325, 2147483648
    %v2004 = vxor.u32 %v1327, 2147483648
    %v2005 = vxor.u32 %v1329, 2147483648
    %v2006 = vxor.u32 %v1331, 2147483648
    %v2007 = vxor.u32 %v1333, 2147483648
    %v2008 = vxor.u32 %v1335, 2147483648
    %v2009 = vxor.u32 %v1337, 2147483648
    %v2010 = vxor.u32 %v1339, 2147483648
    %v2011 = vxor.u32 %v1341, 2147483648
    %v2012 = vxor.u32 %v1343, 2147483648
    %v2013 = vxor.u32 %v1345, 2147483648
    %v2014 = vxor.u32 %v1347, 2147483648
    %v2015 = vxor.u32 %v1349, 2147483648
    %v2016 = vxor.u32 %v1351, 2147483648
    %v2017 = vxor.u32 %v1353, 2147483648
    %v2018 = vxor.u32 %v1355, 2147483648
    %v2019 = vxor.u32 %v1357, 2147483648
    %v2020 = vxor.u32 %v1359, 2147483648
    %v2021 = vxor.u32 %v1361, 2147483648
    %v2022 = vxor.u32 %v1363, 2147483648
    %v2023 = vxor.u32 %v1365, 2147483648
    %v2024 = vxor.u32 %v1367, 2147483648
    %v2025 = vxor.u32 %v1369, 2147483648
    %v2026 = vxor.u32 %v1371, 2147483648
    %v2027 = vxor.u32 %v1373, 2147483648
    %v2028 = vxor.u32 %v1375, 2147483648
    %v2029 = vxor.u32 %v1377, 2147483648
    %v2030 = vxor.u32 %v1379, 2147483648
    %v2031 = vxor.u32 %v1381, 2147483648
    %v2032 = vxor.u32 %v1383, 2147483648
    %v2033 = vxor.u32 %v1385, 2147483648
    %v2034 = vxor.u32 %v1387, 2147483648
    %v2035 = vxor.u32 %v1389, 2147483648
    %v2036 = vxor.u32 %v1391, 2147483648
    %v2037 = vxor.u32 %v1393, 2147483648
    %v2038 = vxor.u32 %v1395, 2147483648
    %v2039 = vxor.u32 %v1397, 2147483648
    %v2040 = vxor.u32 %v1399, 2147483648
    %v2041 = vxor.u32 %v1401, 2147483648
    %v2042 = vmul.f32 %v1978, 1.442695
    %v2043 = vpow.pop %v2042
    %v2044 = vmul.f32 %v1979, 1.442695
    %v2045 = vpow.pop %v2044
    %v2046 = vmul.f32 %v1980, 1.442695
    %v2047 = vpow.pop %v2046
    %v2048 = vmul.f32 %v1981, 1.442695
    %v2049 = vpow.pop %v2048
    %v2050 = vmul.f32 %v1982, 1.442695
    %v2051 = vpow.pop %v2050
    %v2052 = vmul.f32 %v1983, 1.442695
    %v2053 = vpow.pop %v2052
    %v2054 = vmul.f32 %v1984, 1.442695
    %v2055 = vpow.pop %v2054
    %v2056 = vmul.f32 %v1985, 1.442695
    %v2057 = vpow.pop %v2056
    %v2058 = vmul.f32 %v1986, 1.442695
    %v2059 = vpow.pop %v2058
    %v2060 = vmul.f32 %v1987, 1.442695
    %v2061 = vpow.pop %v2060
    %v2062 = vmul.f32 %v1988, 1.442695
    %v2063 = vpow.pop %v2062
    %v2064 = vmul.f32 %v1989, 1.442695
    %v2065 = vpow.pop %v2064
    %v2066 = vmul.f32 %v1990, 1.442695
    %v2067 = vpow.pop %v2066
    %v2068 = vmul.f32 %v1991, 1.442695
    %v2069 = vpow.pop %v2068
    %v2070 = vmul.f32 %v1992, 1.442695
    %v2071 = vpow.pop %v2070
    %v2072 = vmul.f32 %v1993, 1.442695
    %v2073 = vpow.pop %v2072
    %v2074 = vmul.f32 %v1994, 1.442695
    %v2075 = vpow.pop %v2074
    %v2076 = vmul.f32 %v1995, 1.442695
    %v2077 = vpow.pop %v2076
    %v2078 = vmul.f32 %v1996, 1.442695
    %v2079 = vpow.pop %v2078
    %v2080 = vmul.f32 %v1997, 1.442695
    %v2081 = vpow.pop %v2080
    %v2082 = vmul.f32 %v1998, 1.442695
    %v2083 = vpow.pop %v2082
    %v2084 = vmul.f32 %v1999, 1.442695
    %v2085 = vpow.pop %v2084
    %v2086 = vmul.f32 %v2000, 1.442695
    %v2087 = vpow.pop %v2086
    %v2088 = vmul.f32 %v2001, 1.442695
    %v2089 = vpow.pop %v2088
    %v2090 = vmul.f32 %v2002, 1.442695
    %v2091 = vpow.pop %v2090
    %v2092 = vmul.f32 %v2003, 1.442695
    %v2093 = vpow.pop %v2092
    %v2094 = vmul.f32 %v2004, 1.442695
    %v2095 = vpow.pop %v2094
    %v2096 = vmul.f32 %v2005, 1.442695
    %v2097 = vpow.pop %v2096
    %v2098 = vmul.f32 %v2006, 1.442695
    %v2099 = vpow.pop %v2098
    %v2100 = vmul.f32 %v2007, 1.442695
    %v2101 = vpow.pop %v2100
    %v2102 = vmul.f32 %v2008, 1.442695
    %v2103 = vpow.pop %v2102
    %v2104 = vmul.f32 %v2009, 1.442695
    %v2105 = vpow.pop %v2104
    %v2106 = vmul.f32 %v2010, 1.442695
    %v2107 = vpow.pop %v2106
    %v2108 = vmul.f32 %v2011, 1.442695
    %v2109 = vpow.pop %v2108
    %v2110 = vmul.f32 %v2012, 1.442695
    %v2111 = vpow.pop %v2110
    %v2112 = vmul.f32 %v2013, 1.442695
    %v2113 = vpow.pop %v2112
    %v2114 = vmul.f32 %v2014, 1.442695
    %v2115 = vpow.pop %v2114
    %v2116 = vmul.f32 %v2015, 1.442695
    %v2117 = vpow.pop %v2116
    %v2118 = vmul.f32 %v2016, 1.442695
    %v2119 = vpow.pop %v2118
    %v2120 = vmul.f32 %v2017, 1.442695
    %v2121 = vpow.pop %v2120
    %v2122 = vmul.f32 %v2018, 1.442695
    %v2123 = vpow.pop %v2122
    %v2124 = vmul.f32 %v2019, 1.442695
    %v2125 = vpow.pop %v2124
    %v2126 = vmul.f32 %v2020, 1.442695
    %v2127 = vpow.pop %v2126
    %v2128 = vmul.f32 %v2021, 1.442695
    %v2129 = vpow.pop %v2128
    %v2130 = vmul.f32 %v2022, 1.442695
    %v2131 = vpow.pop %v2130
    %v2132 = vmul.f32 %v2023, 1.442695
    %v2133 = vpow.pop %v2132
    %v2134 = vmul.f32 %v2024, 1.442695
    %v2135 = vpow.pop %v2134
    %v2136 = vmul.f32 %v2025, 1.442695
    %v2137 = vpow.pop %v2136
    %v2138 = vmul.f32 %v2026, 1.442695
    %v2139 = vpow.pop %v2138
    %v2140 = vmul.f32 %v2027, 1.442695
    %v2141 = vpow.pop %v2140
    %v2142 = vmul.f32 %v2028, 1.442695
    %v2143 = vpow.pop %v2142
    %v2144 = vmul.f32 %v2029, 1.442695
    %v2145 = vpow.pop %v2144
    %v2146 = vmul.f32 %v2030, 1.442695
    %v2147 = vpow.pop %v2146
    %v2148 = vmul.f32 %v2031, 1.442695
    %v2149 = vpow.pop %v2148
    %v2150 = vmul.f32 %v2032, 1.442695
    %v2151 = vpow.pop %v2150
    %v2152 = vmul.f32 %v2033, 1.442695
    %v2153 = vpow.pop %v2152
    %v2154 = vmul.f32 %v2034, 1.442695
    %v2155 = vpow.pop %v2154
    %v2156 = vmul.f32 %v2035, 1.442695
    %v2157 = vpow.pop %v2156
    %v2158 = vmul.f32 %v2036, 1.442695
    %v2159 = vpow.pop %v2158
    %v2160 = vmul.f32 %v2037, 1.442695
    %v2161 = vpow.pop %v2160
    %v2162 = vmul.f32 %v2038, 1.442695
    %v2163 = vpow.pop %v2162
    %v2164 = vmul.f32 %v2039, 1.442695
    %v2165 = vpow.pop %v2164
    %v2166 = vmul.f32 %v2040, 1.442695
    %v2167 = vpow.pop %v2166
    %v2168 = vmul.f32 %v2041, 1.442695
    %v2169 = vpow.pop %v2168
    %v2170 = vadd.f32 %v2043, 1.0
    %v2171 = vadd.f32 %v2045, 1.0
    %v2172 = vadd.f32 %v2047, 1.0
    %v2173 = vadd.f32 %v2049, 1.0
    %v2174 = vadd.f32 %v2051, 1.0
    %v2175 = vadd.f32 %v2053, 1.0
    %v2176 = vadd.f32 %v2055, 1.0
    %v2177 = vadd.f32 %v2057, 1.0
    %v2178 = vadd.f32 %v2059, 1.0
    %v2179 = vadd.f32 %v2061, 1.0
    %v2180 = vadd.f32 %v2063, 1.0
    %v2181 = vadd.f32 %v2065, 1.0
    %v2182 = vadd.f32 %v2067, 1.0
    %v2183 = vadd.f32 %v2069, 1.0
    %v2184 = vadd.f32 %v2071, 1.0
    %v2185 = vadd.f32 %v2073, 1.0
    %v2186 = vadd.f32 %v2075, 1.0
    %v2187 = vadd.f32 %v2077, 1.0
    %v2188 = vadd.f32 %v2079, 1.0
    %v2189 = vadd.f32 %v2081, 1.0
    %v2190 = vadd.f32 %v2083, 1.0
    %v2191 = vadd.f32 %v2085, 1.0
    %v2192 = vadd.f32 %v2087, 1.0
    %v2193 = vadd.f32 %v2089, 1.0
    %v2194 = vadd.f32 %v2091, 1.0
    %v2195 = vadd.f32 %v2093, 1.0
    %v2196 = vadd.f32 %v2095, 1.0
    %v2197 = vadd.f32 %v2097, 1.0
    %v2198 = vadd.f32 %v2099, 1.0
    %v2199 = vadd.f32 %v2101, 1.0
    %v2200 = vadd.f32 %v2103, 1.0
    %v2201 = vadd.f32 %v2105, 1.0
    %v2202 = vadd.f32 %v2107, 1.0
    %v2203 = vadd.f32 %v2109, 1.0
    %v2204 = vadd.f32 %v2111, 1.0
    %v2205 = vadd.f32 %v2113, 1.0
    %v2206 = vadd.f32 %v2115, 1.0
    %v2207 = vadd.f32 %v2117, 1.0
    %v2208 = vadd.f32 %v2119, 1.0
    %v2209 = vadd.f32 %v2121, 1.0
    %v2210 = vadd.f32 %v2123, 1.0
    %v2211 = vadd.f32 %v2125, 1.0
    %v2212 = vadd.f32 %v2127, 1.0
    %v2213 = vadd.f32 %v2129, 1.0
    %v2214 = vadd.f32 %v2131, 1.0
    %v2215 = vadd.f32 %v2133, 1.0
    %v2216 = vadd.f32 %v2135, 1.0
    %v2217 = vadd.f32 %v2137, 1.0
    %v2218 = vadd.f32 %v2139, 1.0
    %v2219 = vadd.f32 %v2141, 1.0
    %v2220 = vadd.f32 %v2143, 1.0
    %v2221 = vadd.f32 %v2145, 1.0
    %v2222 = vadd.f32 %v2147, 1.0
    %v2223 = vadd.f32 %v2149, 1.0
    %v2224 = vadd.f32 %v2151, 1.0
    %v2225 = vadd.f32 %v2153, 1.0
    %v2226 = vadd.f32 %v2155, 1.0
    %v2227 = vadd.f32 %v2157, 1.0
    %v2228 = vadd.f32 %v2159, 1.0
    %v2229 = vadd.f32 %v2161, 1.0
    %v2230 = vadd.f32 %v2163, 1.0
    %v2231 = vadd.f32 %v2165, 1.0
    %v2232 = vadd.f32 %v2167, 1.0
    %v2233 = vadd.f32 %v2169, 1.0
    %v2234 = vrcp.pop %v2170
    %v2235 = vmul.f32 1.0, %v2234
    %v2236 = vrcp.pop %v2171
    %v2237 = vmul.f32 1.0, %v2236
    %v2238 = vrcp.pop %v2172
    %v2239 = vmul.f32 1.0, %v2238
    %v2240 = vrcp.pop %v2173
    %v2241 = vmul.f32 1.0, %v2240
    %v2242 = vrcp.pop %v2174
    %v2243 = vmul.f32 1.0, %v2242
    %v2244 = vrcp.pop %v2175
    %v2245 = vmul.f32 1.0, %v2244
    %v2246 = vrcp.pop %v2176
    %v2247 = vmul.f32 1.0, %v2246
    %v2248 = vrcp.pop %v2177
    %v2249 = vmul.f32 1.0, %v2248
    %v2250 = vrcp.pop %v2178
    %v2251 = vmul.f32 1.0, %v2250
    %v2252 = vrcp.pop %v2179
    %v2253 = vmul.f32 1.0, %v2252
    %v2254 = vrcp.pop %v2180
    %v2255 = vmul.f32 1.0, %v2254
    %v2256 = vrcp.pop %v2181
    %v2257 = vmul.f32 1.0, %v2256
    %v2258 = vrcp.pop %v2182
    %v2259 = vmul.f32 1.0, %v2258
    %v2260 = vrcp.pop %v2183
    %v2261 = vmul.f32 1.0, %v2260
    %v2262 = vrcp.pop %v2184
    %v2263 = vmul.f32 1.0, %v2262
    %v2264 = vrcp.pop %v2185
    %v2265 = vmul.f32 1.0, %v2264
    %v2266 = vrcp.pop %v2186
    %v2267 = vmul.f32 1.0, %v2266
    %v2268 = vrcp.pop %v2187
    %v2269 = vmul.f32 1.0, %v2268
    %v2270 = vrcp.pop %v2188
    %v2271 = vmul.f32 1.0, %v2270
    %v2272 = vrcp.pop %v2189
    %v2273 = vmul.f32 1.0, %v2272
    %v2274 = vrcp.pop %v2190
    %v2275 = vmul.f32 1.0, %v2274
    %v2276 = vrcp.pop %v2191
    %v2277 = vmul.f32 1.0, %v2276
    %v2278 = vrcp.pop %v2192
    %v2279 = vmul.f32 1.0, %v2278
    %v2280 = vrcp.pop %v2193
    %v2281 = vmul.f32 1.0, %v2280
    %v2282 = vrcp.pop %v2194
    %v2283 = vmul.f32 1.0, %v2282
    %v2284 = vrcp.pop %v2195
    %v2285 = vmul.f32 1.0, %v2284
    %v2286 = vrcp.pop %v2196
    %v2287 = vmul.f32 1.0, %v2286
    %v2288 = vrcp.pop %v2197
    %v2289 = vmul.f32 1.0, %v2288
    %v2290 = vrcp.pop %v2198
    %v2291 = vmul.f32 1.0, %v2290
    %v2292 = vrcp.pop %v2199
    %v2293 = vmul.f32 1.0, %v2292
    %v2294 = vrcp.pop %v2200
    %v2295 = vmul.f32 1.0, %v2294
    %v2296 = vrcp.pop %v2201
    %v2297 = vmul.f32 1.0, %v2296
    %v2298 = vrcp.pop %v2202
    %v2299 = vmul.f32 1.0, %v2298
    %v2300 = vrcp.pop %v2203
    %v2301 = vmul.f32 1.0, %v2300
    %v2302 = vrcp.pop %v2204
    %v2303 = vmul.f32 1.0, %v2302
    %v2304 = vrcp.pop %v2205
    %v2305 = vmul.f32 1.0, %v2304
    %v2306 = vrcp.pop %v2206
    %v2307 = vmul.f32 1.0, %v2306
    %v2308 = vrcp.pop %v2207
    %v2309 = vmul.f32 1.0, %v2308
    %v2310 = vrcp.pop %v2208
    %v2311 = vmul.f32 1.0, %v2310
    %v2312 = vrcp.pop %v2209
    %v2313 = vmul.f32 1.0, %v2312
    %v2314 = vrcp.pop %v2210
    %v2315 = vmul.f32 1.0, %v2314
    %v2316 = vrcp.pop %v2211
    %v2317 = vmul.f32 1.0, %v2316
    %v2318 = vrcp.pop %v2212
    %v2319 = vmul.f32 1.0, %v2318
    %v2320 = vrcp.pop %v2213
    %v2321 = vmul.f32 1.0, %v2320
    %v2322 = vrcp.pop %v2214
    %v2323 = vmul.f32 1.0, %v2322
    %v2324 = vrcp.pop %v2215
    %v2325 = vmul.f32 1.0, %v2324
    %v2326 = vrcp.pop %v2216
    %v2327 = vmul.f32 1.0, %v2326
    %v2328 = vrcp.pop %v2217
    %v2329 = vmul.f32 1.0, %v2328
    %v2330 = vrcp.pop %v2218
    %v2331 = vmul.f32 1.0, %v2330
    %v2332 = vrcp.pop %v2219
    %v2333 = vmul.f32 1.0, %v2332
    %v2334 = vrcp.pop %v2220
    %v2335 = vmul.f32 1.0, %v2334
    %v2336 = vrcp.pop %v2221
    %v2337 = vmul.f32 1.0, %v2336
    %v2338 = vrcp.pop %v2222
    %v2339 = vmul.f32 1.0, %v2338
    %v2340 = vrcp.pop %v2223
    %v2341 = vmul.f32 1.0, %v2340
    %v2342 = vrcp.pop %v2224
    %v2343 = vmul.f32 1.0, %v2342
    %v2344 = vrcp.pop %v2225
    %v2345 = vmul.f32 1.0, %v2344
    %v2346 = vrcp.pop %v2226
    %v2347 = vmul.f32 1.0, %v2346
    %v2348 = vrcp.pop %v2227
    %v2349 = vmul.f32 1.0, %v2348
    %v2350 = vrcp.pop %v2228
    %v2351 = vmul.f32 1.0, %v2350
    %v2352 = vrcp.pop %v2229
    %v2353 = vmul.f32 1.0, %v2352
    %v2354 = vrcp.pop %v2230
    %v2355 = vmul.f32 1.0, %v2354
    %v2356 = vrcp.pop %v2231
    %v2357 = vmul.f32 1.0, %v2356
    %v2358 = vrcp.pop %v2232
    %v2359 = vmul.f32 1.0, %v2358
    %v2360 = vrcp.pop %v2233
    %v2361 = vmul.f32 1.0, %v2360
    %v2362 = vsub.f32 %v1914, %v76
    %v2363 = vsub.f32 %v1915, %v77
    %v2364 = vsub.f32 %v1916, %v78
    %v2365 = vsub.f32 %v1917, %v79
    %v2366 = vsub.f32 %v1918, %v80
    %v2367 = vsub.f32 %v1919, %v81
    %v2368 = vsub.f32 %v1920, %v82
    %v2369 = vsub.f32 %v1921, %v83
    %v2370 = vsub.f32 %v1922, %v84
    %v2371 = vsub.f32 %v1923, %v85
    %v2372 = vsub.f32 %v1924, %v86
    %v2373 = vsub.f32 %v1925, %v87
    %v2374 = vsub.f32 %v1926, %v88
    %v2375 = vsub.f32 %v1927, %v89
    %v2376 = vsub.f32 %v1928, %v90
    %v2377 = vsub.f32 %v1929, %v91
    %v2378 = vsub.f32 %v1930, %v92
    %v2379 = vsub.f32 %v1931, %v93
    %v2380 = vsub.f32 %v1932, %v94
    %v2381 = vsub.f32 %v1933, %v95
    %v2382 = vsub.f32 %v1934, %v96
    %v2383 = vsub.f32 %v1935, %v97
    %v2384 = vsub.f32 %v1936, %v98
    %v2385 = vsub.f32 %v1937, %v99
    %v2386 = vsub.f32 %v1938, %v100
    %v2387 = vsub.f32 %v1939, %v101
    %v2388 = vsub.f32 %v1940, %v102
    %v2389 = vsub.f32 %v1941, %v103
    %v2390 = vsub.f32 %v1942, %v104
    %v2391 = vsub.f32 %v1943, %v105
    %v2392 = vsub.f32 %v1944, %v106
    %v2393 = vsub.f32 %v1945, %v107
    %v2394 = vsub.f32 %v1946, %v108
    %v2395 = vsub.f32 %v1947, %v109
    %v2396 = vsub.f32 %v1948, %v110
    %v2397 = vsub.f32 %v1949, %v111
    %v2398 = vsub.f32 %v1950, %v112
    %v2399 = vsub.f32 %v1951, %v113
    %v2400 = vsub.f32 %v1952, %v114
    %v2401 = vsub.f32 %v1953, %v115
    %v2402 = vsub.f32 %v1954, %v116
    %v2403 = vsub.f32 %v1955, %v117
    %v2404 = vsub.f32 %v1956, %v118
    %v2405 = vsub.f32 %v1957, %v119
    %v2406 = vsub.f32 %v1958, %v120
    %v2407 = vsub.f32 %v1959, %v121
    %v2408 = vsub.f32 %v1960, %v122
    %v2409 = vsub.f32 %v1961, %v123
    %v2410 = vsub.f32 %v1962, %v124
    %v2411 = vsub.f32 %v1963, %v125
    %v2412 = vsub.f32 %v1964, %v126
    %v2413 = vsub.f32 %v1965, %v127
    %v2414 = vsub.f32 %v1966, %v128
    %v2415 = vsub.f32 %v1967, %v129
    %v2416 = vsub.f32 %v1968, %v130
    %v2417 = vsub.f32 %v1969, %v131
    %v2418 = vsub.f32 %v1970, %v132
    %v2419 = vsub.f32 %v1971, %v133
    %v2420 = vsub.f32 %v1972, %v134
    %v2421 = vsub.f32 %v1973, %v135
    %v2422 = vsub.f32 %v1974, %v136
    %v2423 = vsub.f32 %v1975, %v137
    %v2424 = vsub.f32 %v1976, %v138
    %v2425 = vsub.f32 %v1977, %v139
    %v2426 = vmul.f32 %v2235, %v2362
    %v2427 = vmul.f32 %v2237, %v2363
    %v2428 = vmul.f32 %v2239, %v2364
    %v2429 = vmul.f32 %v2241, %v2365
    %v2430 = vmul.f32 %v2243, %v2366
    %v2431 = vmul.f32 %v2245, %v2367
    %v2432 = vmul.f32 %v2247, %v2368
    %v2433 = vmul.f32 %v2249, %v2369
    %v2434 = vmul.f32 %v2251, %v2370
    %v2435 = vmul.f32 %v2253, %v2371
    %v2436 = vmul.f32 %v2255, %v2372
    %v2437 = vmul.f32 %v2257, %v2373
    %v2438 = vmul.f32 %v2259, %v2374
    %v2439 = vmul.f32 %v2261, %v2375
    %v2440 = vmul.f32 %v2263, %v2376
    %v2441 = vmul.f32 %v2265, %v2377
    %v2442 = vmul.f32 %v2267, %v2378
    %v2443 = vmul.f32 %v2269, %v2379
    %v2444 = vmul.f32 %v2271, %v2380
    %v2445 = vmul.f32 %v2273, %v2381
    %v2446 = vmul.f32 %v2275, %v2382
    %v2447 = vmul.f32 %v2277, %v2383
    %v2448 = vmul.f32 %v2279, %v2384
    %v2449 = vmul.f32 %v2281, %v2385
    %v2450 = vmul.f32 %v2283, %v2386
    %v2451 = vmul.f32 %v2285, %v2387
    %v2452 = vmul.f32 %v2287, %v2388
    %v2453 = vmul.f32 %v2289, %v2389
    %v2454 = vmul.f32 %v2291, %v2390
    %v2455 = vmul.f32 %v2293, %v2391
    %v2456 = vmul.f32 %v2295, %v2392
    %v2457 = vmul.f32 %v2297, %v2393
    %v2458 = vmul.f32 %v2299, %v2394
    %v2459 = vmul.f32 %v2301, %v2395
    %v2460 = vmul.f32 %v2303, %v2396
    %v2461 = vmul.f32 %v2305, %v2397
    %v2462 = vmul.f32 %v2307, %v2398
    %v2463 = vmul.f32 %v2309, %v2399
    %v2464 = vmul.f32 %v2311, %v2400
    %v2465 = vmul.f32 %v2313, %v2401
    %v2466 = vmul.f32 %v2315, %v2402
    %v2467 = vmul.f32 %v2317, %v2403
    %v2468 = vmul.f32 %v2319, %v2404
    %v2469 = vmul.f32 %v2321, %v2405
    %v2470 = vmul.f32 %v2323, %v2406
    %v2471 = vmul.f32 %v2325, %v2407
    %v2472 = vmul.f32 %v2327, %v2408
    %v2473 = vmul.f32 %v2329, %v2409
    %v2474 = vmul.f32 %v2331, %v2410
    %v2475 = vmul.f32 %v2333, %v2411
    %v2476 = vmul.f32 %v2335, %v2412
    %v2477 = vmul.f32 %v2337, %v2413
    %v2478 = vmul.f32 %v2339, %v2414
    %v2479 = vmul.f32 %v2341, %v2415
    %v2480 = vmul.f32 %v2343, %v2416
    %v2481 = vmul.f32 %v2345, %v2417
    %v2482 = vmul.f32 %v2347, %v2418
    %v2483 = vmul.f32 %v2349, %v2419
    %v2484 = vmul.f32 %v2351, %v2420
    %v2485 = vmul.f32 %v2353, %v2421
    %v2486 = vmul.f32 %v2355, %v2422
    %v2487 = vmul.f32 %v2357, %v2423
    %v2488 = vmul.f32 %v2359, %v2424
    %v2489 = vmul.f32 %v2361, %v2425
    %v2490 = vadd.f32 %v76, %v2426
    %v2491 = vadd.f32 %v77, %v2427
    %v2492 = vadd.f32 %v78, %v2428
    %v2493 = vadd.f32 %v79, %v2429
    %v2494 = vadd.f32 %v80, %v2430
    %v2495 = vadd.f32 %v81, %v2431
    %v2496 = vadd.f32 %v82, %v2432
    %v2497 = vadd.f32 %v83, %v2433
    %v2498 = vadd.f32 %v84, %v2434
    %v2499 = vadd.f32 %v85, %v2435
    %v2500 = vadd.f32 %v86, %v2436
    %v2501 = vadd.f32 %v87, %v2437
    %v2502 = vadd.f32 %v88, %v2438
    %v2503 = vadd.f32 %v89, %v2439
    %v2504 = vadd.f32 %v90, %v2440
    %v2505 = vadd.f32 %v91, %v2441
    %v2506 = vadd.f32 %v92, %v2442
    %v2507 = vadd.f32 %v93, %v2443
    %v2508 = vadd.f32 %v94, %v2444
    %v2509 = vadd.f32 %v95, %v2445
    %v2510 = vadd.f32 %v96, %v2446
    %v2511 = vadd.f32 %v97, %v2447
    %v2512 = vadd.f32 %v98, %v2448
    %v2513 = vadd.f32 %v99, %v2449
    %v2514 = vadd.f32 %v100, %v2450
    %v2515 = vadd.f32 %v101, %v2451
    %v2516 = vadd.f32 %v102, %v2452
    %v2517 = vadd.f32 %v103, %v2453
    %v2518 = vadd.f32 %v104, %v2454
    %v2519 = vadd.f32 %v105, %v2455
    %v2520 = vadd.f32 %v106, %v2456
    %v2521 = vadd.f32 %v107, %v2457
    %v2522 = vadd.f32 %v108, %v2458
    %v2523 = vadd.f32 %v109, %v2459
    %v2524 = vadd.f32 %v110, %v2460
    %v2525 = vadd.f32 %v111, %v2461
    %v2526 = vadd.f32 %v112, %v2462
    %v2527 = vadd.f32 %v113, %v2463
    %v2528 = vadd.f32 %v114, %v2464
    %v2529 = vadd.f32 %v115, %v2465
    %v2530 = vadd.f32 %v116, %v2466
    %v2531 = vadd.f32 %v117, %v2467
    %v2532 = vadd.f32 %v118, %v2468
    %v2533 = vadd.f32 %v119, %v2469
    %v2534 = vadd.f32 %v120, %v2470
    %v2535 = vadd.f32 %v121, %v2471
    %v2536 = vadd.f32 %v122, %v2472
    %v2537 = vadd.f32 %v123, %v2473
    %v2538 = vadd.f32 %v124, %v2474
    %v2539 = vadd.f32 %v125, %v2475
    %v2540 = vadd.f32 %v126, %v2476
    %v2541 = vadd.f32 %v127, %v2477
    %v2542 = vadd.f32 %v128, %v2478
    %v2543 = vadd.f32 %v129, %v2479
    %v2544 = vadd.f32 %v130, %v2480
    %v2545 = vadd.f32 %v131, %v2481
    %v2546 = vadd.f32 %v132, %v2482
    %v2547 = vadd.f32 %v133, %v2483
    %v2548 = vadd.f32 %v134, %v2484
    %v2549 = vadd.f32 %v135, %v2485
    %v2550 = vadd.f32 %v136, %v2486
    %v2551 = vadd.f32 %v137, %v2487
    %v2552 = vadd.f32 %v138, %v2488
    %v2553 = vadd.f32 %v139, %v2489
    %2554 = vst [vmem:[#allocation10] sm:$0xff] %v2490
    %2555 = vst [vmem:[#allocation10 + $0x8] sm:$0xff] %v2491
    %2556 = vst [vmem:[#allocation10 + $0x10] sm:$0xff] %v2492
    %2557 = vst [vmem:[#allocation10 + $0x18] sm:$0xff] %v2493
    %2558 = vst [vmem:[#allocation10 + $0x20] sm:$0xff] %v2494
    %2559 = vst [vmem:[#allocation10 + $0x28] sm:$0xff] %v2495
    %2560 = vst [vmem:[#allocation10 + $0x30] sm:$0xff] %v2496
    %2561 = vst [vmem:[#allocation10 + $0x38] sm:$0xff] %v2497
    %2562 = vst [vmem:[#allocation10 + $0x40] sm:$0xff] %v2498
    %2563 = vst [vmem:[#allocation10 + $0x48] sm:$0xff] %v2499
    %2564 = vst [vmem:[#allocation10 + $0x50] sm:$0xff] %v2500
    %2565 = vst [vmem:[#allocation10 + $0x58] sm:$0xff] %v2501
    %2566 = vst [vmem:[#allocation10 + $0x60] sm:$0xff] %v2502
    %2567 = vst [vmem:[#allocation10 + $0x68] sm:$0xff] %v2503
    %2568 = vst [vmem:[#allocation10 + $0x70] sm:$0xff] %v2504
    %2569 = vst [vmem:[#allocation10 + $0x78] sm:$0xff] %v2505
    %2570 = vst [vmem:[#allocation10 + $0x80] sm:$0xff] %v2506
    %2571 = vst [vmem:[#allocation10 + $0x88] sm:$0xff] %v2507
    %2572 = vst [vmem:[#allocation10 + $0x90] sm:$0xff] %v2508
    %2573 = vst [vmem:[#allocation10 + $0x98] sm:$0xff] %v2509
    %2574 = vst [vmem:[#allocation10 + $0xa0] sm:$0xff] %v2510
    %2575 = vst [vmem:[#allocation10 + $0xa8] sm:$0xff] %v2511
    %2576 = vst [vmem:[#allocation10 + $0xb0] sm:$0xff] %v2512
    %2577 = vst [vmem:[#allocation10 + $0xb8] sm:$0xff] %v2513
    %2578 = vst [vmem:[#allocation10 + $0xc0] sm:$0xff] %v2514
    %2579 = vst [vmem:[#allocation10 + $0xc8] sm:$0xff] %v2515
    %2580 = vst [vmem:[#allocation10 + $0xd0] sm:$0xff] %v2516
    %2581 = vst [vmem:[#allocation10 + $0xd8] sm:$0xff] %v2517
    %2582 = vst [vmem:[#allocation10 + $0xe0] sm:$0xff] %v2518
    %2583 = vst [vmem:[#allocation10 + $0xe8] sm:$0xff] %v2519
    %2584 = vst [vmem:[#allocation10 + $0xf0] sm:$0xff] %v2520
    %2585 = vst [vmem:[#allocation10 + $0xf8] sm:$0xff] %v2521
    %2586 = vst [vmem:[#allocation10 + $0x100] sm:$0xff] %v2522
    %2587 = vst [vmem:[#allocation10 + $0x108] sm:$0xff] %v2523
    %2588 = vst [vmem:[#allocation10 + $0x110] sm:$0xff] %v2524
    %2589 = vst [vmem:[#allocation10 + $0x118] sm:$0xff] %v2525
    %2590 = vst [vmem:[#allocation10 + $0x120] sm:$0xff] %v2526
    %2591 = vst [vmem:[#allocation10 + $0x128] sm:$0xff] %v2527
    %2592 = vst [vmem:[#allocation10 + $0x130] sm:$0xff] %v2528
    %2593 = vst [vmem:[#allocation10 + $0x138] sm:$0xff] %v2529
    %2594 = vst [vmem:[#allocation10 + $0x140] sm:$0xff] %v2530
    %2595 = vst [vmem:[#allocation10 + $0x148] sm:$0xff] %v2531
    %2596 = vst [vmem:[#allocation10 + $0x150] sm:$0xff] %v2532
    %2597 = vst [vmem:[#allocation10 + $0x158] sm:$0xff] %v2533
    %2598 = vst [vmem:[#allocation10 + $0x160] sm:$0xff] %v2534
    %2599 = vst [vmem:[#allocation10 + $0x168] sm:$0xff] %v2535
    %2600 = vst [vmem:[#allocation10 + $0x170] sm:$0xff] %v2536
    %2601 = vst [vmem:[#allocation10 + $0x178] sm:$0xff] %v2537
    %2602 = vst [vmem:[#allocation10 + $0x180] sm:$0xff] %v2538
    %2603 = vst [vmem:[#allocation10 + $0x188] sm:$0xff] %v2539
    %2604 = vst [vmem:[#allocation10 + $0x190] sm:$0xff] %v2540
    %2605 = vst [vmem:[#allocation10 + $0x198] sm:$0xff] %v2541
    %2606 = vst [vmem:[#allocation10 + $0x1a0] sm:$0xff] %v2542
    %2607 = vst [vmem:[#allocation10 + $0x1a8] sm:$0xff] %v2543
    %2608 = vst [vmem:[#allocation10 + $0x1b0] sm:$0xff] %v2544
    %2609 = vst [vmem:[#allocation10 + $0x1b8] sm:$0xff] %v2545
    %2610 = vst [vmem:[#allocation10 + $0x1c0] sm:$0xff] %v2546
    %2611 = vst [vmem:[#allocation10 + $0x1c8] sm:$0xff] %v2547
    %2612 = vst [vmem:[#allocation10 + $0x1d0] sm:$0xff] %v2548
    %2613 = vst [vmem:[#allocation10 + $0x1d8] sm:$0xff] %v2549
    %2614 = vst [vmem:[#allocation10 + $0x1e0] sm:$0xff] %v2550
    %2615 = vst [vmem:[#allocation10 + $0x1e8] sm:$0xff] %v2551
    %2616 = vst [vmem:[#allocation10 + $0x1f0] sm:$0xff] %v2552
    %2617 = vst [vmem:[#allocation10 + $0x1f8] sm:$0xff] %v2553
    // Predicated region
    $region38: #{tpu_custom_call.1} parent=1 // pred_check
      _
    $region39: #{tpu_custom_call.1} parent=1 // pred_check_branch
      %2619 = sbr.rel (0) target = $region41
    $region40: #{tpu_custom_call.1} parent=1 // pred_region
      %s2621 = ssub.s32 8192, 8192
      %2622 = vsyncadd [#allocation4], %s2621
      %s2623 = sshll.u32 [#allocation10], 4
      %s2624 = int_to_ptr.vmem [resolvable:$true] %s2623
      %2629 = dma.vmem_to_hbm [thread:$0]  %s2624, 8192, %s5, [#allocation4], 128, 128, 8
    $region41: #{tpu_custom_call.1} parent=1 // pred_fallthru
      _
    // Predicated region
    $region42: #{tpu_custom_call.1} parent=1 // pred_check
      _
    $region43: #{tpu_custom_call.1} parent=1 // pred_check_branch
      %2631 = sbr.rel (0) target = $region45
    $region44: #{tpu_custom_call.1} parent=1 // pred_region
      %2632 = dma.done [#allocation4], 8192
    $region45: #{tpu_custom_call.1} parent=1 // pred_fallthru
      _
    %2633 = vsyncpa [#allocation3], 1
    %2634 = vsyncpa [#allocation6], 1
    %2635 = vsyncpa [#allocation9], 1
    %2636 = vsyncpa [#allocation4], 1

</llo_original>
